<compile_context>
chip_gen: v5e
topology: v5e:2x2
jax: 0.10.0
libtpu: 0.0.40
codegen_flags: <defaults>
</compile_context>

<pallas_src>
import functools

import jax
import jax.numpy as jnp
from jax.experimental import pallas as pl
from jax.experimental.pallas import tpu as pltpu

LANE = 128


# ---------------------------------------------------------------------------
# Kernel 1: conv as 4 window-folded MXU matmuls + bias + BN partial stats
# ---------------------------------------------------------------------------
def _conv_bn_stats_kernel(xe_ref, xh_ref, w_ref, b_ref, y_ref, stat_ref):
    # xe_ref  : (1, TH, Wo+1, 4*C_in) bf16  quad-parity rows u in [TH*t, TH*(t+1))
    # xh_ref  : (1, 1,  Wo+1, 4*C_in) bf16  halo row u = TH*(t+1)
    # w_ref   : (4, 4*C_in, Cop)      bf16  resident window weights (zero rows for fake taps)
    # b_ref   : (1, Cop)              f32   resident conv bias
    # y_ref   : (1, 1, TH*Wo, Cop)    bf16  conv + bias output tile
    # stat_ref: (1, 1, 2, Cop)        f32   per-tile [sum, sum_sq] over TH*Wo positions
    _, TH, Wo1, K4 = xe_ref.shape
    Wo = Wo1 - 1
    M = TH * Wo

    # du = 0 windows: lazy Ref slices at the two column offsets (no eager full load).
    a00 = xe_ref[0, :, 0:Wo, :].reshape(M, K4)
    a01 = xe_ref[0, :, 1:Wo + 1, :].reshape(M, K4)

    # du = 1 windows need rows [TH*t+1, TH*(t+1)] = main[1:] ++ halo (major-axis concat).
    if TH > 1:
        nxt = jnp.concatenate([xe_ref[0, 1:, :, :], xh_ref[0]], axis=0)
    else:
        nxt = xh_ref[0]
    a10 = nxt[:, 0:Wo, :].reshape(M, K4)
    a11 = nxt[:, 1:Wo + 1, :].reshape(M, K4)

    acc = jnp.dot(a00, w_ref[0], preferred_element_type=jnp.float32)
    acc += jnp.dot(a01, w_ref[1], preferred_element_type=jnp.float32)
    acc += jnp.dot(a10, w_ref[2], preferred_element_type=jnp.float32)
    acc += jnp.dot(a11, w_ref[3], preferred_element_type=jnp.float32)
    acc += b_ref[...]                                   # broadcast (1, Cop)

    # BN partial stats from the f32 accumulator (before the bf16 store).
    stat_ref[0, 0, 0:1, :] = jnp.sum(acc, axis=0, keepdims=True)
    stat_ref[0, 0, 1:2, :] = jnp.sum(acc * acc, axis=0, keepdims=True)

    y_ref[0, 0] = acc.astype(y_ref.dtype)               # bf16 intermediate (documented trade-off)


# ---------------------------------------------------------------------------
# Kernel 2: BN apply (precomputed scale/shift) + LeakyReLU + fused NCHW transpose
# ---------------------------------------------------------------------------
def _bn_lrelu_transpose_kernel(y_ref, scale_ref, shift_ref, o_ref, *, slope):
    # y_ref    : (1, TS, Cop) bf16
    # scale_ref: (1, Cop)     f32   resident
    # shift_ref: (1, Cop)     f32   resident
    # o_ref    : (1, C_out, TS) f32  transposed, channel-sliced output tile
    c_out = o_ref.shape[1]
    z = y_ref[0].astype(jnp.float32) * scale_ref[...] + shift_ref[...]
    z = jnp.where(z >= 0, z, slope * z)
    # XLU transpose rides an otherwise idle slot; drop padded channels on the store.
    o_ref[0] = jnp.transpose(z)[:c_out, :]


# ---------------------------------------------------------------------------
# Tiling heuristics
# ---------------------------------------------------------------------------
def _pick_row_tile(ho, wo, max_rows=1024):
    # Largest divisor TH of Ho with TH*Wo <= max_rows (exact tiles: the BN stats
    # sums must never include out-of-bounds garbage rows).
    th = 1
    for cand in range(1, ho + 1):
        if ho % cand == 0 and cand * wo <= max_rows:
            th = cand
    return th


def _pick_spatial_tile(hw, cap=2048):
    # Kernel 2 is purely elementwise -> a cdiv grid with a masked uneven tail is safe.
    return hw if hw <= cap else cap


# ---------------------------------------------------------------------------
# Wrapper
# ---------------------------------------------------------------------------
def conv_block_forward(x_nchw, w_oihw, conv_bias, gamma, beta,
                       *, eps=1e-5, slope=0.2):
    N, C_in, H, W = x_nchw.shape
    C_out = w_oihw.shape[0]
    Ho = (H - 1) // 2 + 1
    Wo = (W - 1) // 2 + 1
    Cop = ((C_out + LANE - 1) // LANE) * LANE           # lane-dense output channels
    K4 = 4 * C_in

    # ---- input prep: one pad + one transpose pass, bf16 (no im2col) ----
    Hp = 2 * (Ho + 1)
    Wp = 2 * (Wo + 1)
    xp = jnp.pad(x_nchw.astype(jnp.bfloat16),
                 ((0, 0), (0, 0), (1, Hp - H - 1), (1, Wp - W - 1)))
    # quad-parity layout: xq[n, u, q, (s*2 + r)*C_in + c] = xpad[n, 2u+s, 2q+r, c]
    xq = xp.reshape(N, C_in, Ho + 1, 2, Wo + 1, 2)
    xq = jnp.transpose(xq, (0, 2, 4, 3, 5, 1)).reshape(N, Ho + 1, Wo + 1, K4)

    # ---- weights: 4 window positions x (4*C_in) x Cop, zero rows for kh==3 / kw==3 ----
    w_t = jnp.transpose(w_oihw, (2, 3, 1, 0))                        # (kh, kw, c, o)
    w_t = jnp.pad(w_t, ((0, 1), (0, 1), (0, 0), (0, Cop - C_out)))   # (4, 4, C_in, Cop)
    w4 = w_t.reshape(2, 2, 2, 2, C_in, Cop)                          # (du, s, dq, r, c, o)
    w4 = jnp.transpose(w4, (0, 2, 1, 3, 4, 5)).reshape(4, K4, Cop).astype(jnp.bfloat16)
    bias2d = jnp.pad(conv_bias.astype(jnp.float32), (0, Cop - C_out)).reshape(1, Cop)

    TH = _pick_row_tile(Ho, Wo)
    nt = Ho // TH

    y_conv, tile_stats = pl.pallas_call(
        _conv_bn_stats_kernel,
        out_shape=(jax.ShapeDtypeStruct((N, nt, TH * Wo, Cop), jnp.bfloat16),
                   jax.ShapeDtypeStruct((N, nt, 2, Cop), jnp.float32)),
        grid=(N, nt),
        in_specs=[
            pl.BlockSpec((1, TH, Wo + 1, K4), lambda n, t: (n, t, 0, 0)),          # main rows
            pl.BlockSpec((1, 1, Wo + 1, K4), lambda n, t: (n, TH * (t + 1), 0, 0)),  # halo row
            pl.BlockSpec((4, K4, Cop), lambda n, t: (0, 0, 0)),                     # resident weights
            pl.BlockSpec((1, Cop), lambda n, t: (0, 0)),                            # resident bias
        ],
        out_specs=(pl.BlockSpec((1, 1, TH * Wo, Cop), lambda n, t: (n, t, 0, 0)),
                   pl.BlockSpec((1, 1, 2, Cop), lambda n, t: (n, t, 0, 0))),
        compiler_params=pltpu.CompilerParams(
            dimension_semantics=("parallel", "parallel"),
            vmem_limit_bytes=32 * 1024 * 1024),
    )(xq, xq, w4, bias2d)

    # ---- finalize BN batch statistics (tiny per-channel reduction) ----
    # TODO(synk): the cross-tile mean/var finalize is a tiny XLA reduction (O(N*nt*Cop));
    # a centered second pass / Welford combine would be more robust for extreme M.
    M_total = N * Ho * Wo
    ch_sum = jnp.sum(tile_stats[:, :, 0, :], axis=(0, 1))
    ch_sumsq = jnp.sum(tile_stats[:, :, 1, :], axis=(0, 1))
    mean = ch_sum / M_total
    var = jnp.maximum(ch_sumsq / M_total - mean * mean, 0.0)
    inv_std = jax.lax.rsqrt(var + eps)
    gamma_p = jnp.pad(gamma.astype(jnp.float32), (0, Cop - C_out), constant_values=1.0)
    beta_p = jnp.pad(beta.astype(jnp.float32), (0, Cop - C_out))
    scale = (gamma_p * inv_std).reshape(1, Cop)
    shift = (beta_p - mean * gamma_p * inv_std).reshape(1, Cop)

    # ---- kernel 2: streamed BN + LeakyReLU with fused channel-slice + NCHW transpose ----
    HW = Ho * Wo
    TS = _pick_spatial_tile(HW)
    nj = pl.cdiv(HW, TS)
    y2 = y_conv.reshape(N, HW, Cop)                     # contiguous merge, no data movement

    out_flat = pl.pallas_call(
        functools.partial(_bn_lrelu_transpose_kernel, slope=slope),
        out_shape=jax.ShapeDtypeStruct((N, C_out, HW), jnp.float32),
        grid=(N, nj),
        in_specs=[
            pl.BlockSpec((1, TS, Cop), lambda n, j: (n, j, 0)),
            pl.BlockSpec((1, Cop), lambda n, j: (0, 0)),            # resident scale
            pl.BlockSpec((1, Cop), lambda n, j: (0, 0)),            # resident shift
        ],
        out_specs=pl.BlockSpec((1, C_out, TS), lambda n, j: (n, 0, j)),
        compiler_params=pltpu.CompilerParams(
            dimension_semantics=("parallel", "parallel"),
            vmem_limit_bytes=32 * 1024 * 1024),
    )(y2, scale, shift)

    return out_flat.reshape(N, C_out, Ho, Wo)           # free reshape, already NCHW


# ---------------------------------------------------------------------------
# Pure-JAX reference (correctness check)
# ---------------------------------------------------------------------------
def conv_block_reference(x, w, b, gamma, beta, *, eps=1e-5, slope=0.2):
    y = jax.lax.conv_general_dilated(
        x.astype(jnp.float32), w.astype(jnp.float32),
        window_strides=(2, 2), padding=((1, 1), (1, 1)),
        dimension_numbers=("NCHW", "OIHW", "NCHW"),
        precision=jax.lax.Precision.HIGHEST,
    ) + b.reshape(1, -1, 1, 1)
    mean = jnp.mean(y, axis=(0, 2, 3), keepdims=True)
    var = jnp.mean((y - mean) ** 2, axis=(0, 2, 3), keepdims=True)
    z = (y - mean) * jax.lax.rsqrt(var + eps)
    z = z * gamma.reshape(1, -1, 1, 1) + beta.reshape(1, -1, 1, 1)
    return jnp.where(z >= 0, z, slope * z)


if __name__ == "__main__":
    N, C_in, H, W = 2, 4, 16, 16
    C_out = 8

    key = jax.random.PRNGKey(0)
    k_x, k_w, k_b, k_g, k_beta = jax.random.split(key, 5)

    x = jax.random.normal(k_x, (N, C_in, H, W), dtype=jnp.float32)
    w = jax.random.normal(k_w, (C_out, C_in, 3, 3), dtype=jnp.float32) * 0.1
    conv_bias = jax.random.normal(k_b, (C_out,), dtype=jnp.float32) * 0.1
    gamma = 1.0 + 0.1 * jax.random.normal(k_g, (C_out,), dtype=jnp.float32)
    beta = 0.1 * jax.random.normal(k_beta, (C_out,), dtype=jnp.float32)

    fwd = jax.jit(conv_block_forward)
    out = jax.block_until_ready(fwd(x, w, conv_bias, gamma, beta))

    ref = conv_block_reference(x, w, conv_bias, gamma, beta)
    assert out.shape == (N, C_out, H // 2, W // 2), out.shape
    max_err = float(jnp.max(jnp.abs(out - ref)))
    # Tolerance reflects the intentional bf16 trade-off (bf16 conv operands + bf16
    # conv intermediate storage); BN / LeakyReLU math is f32 throughout.
    assert jnp.allclose(out, ref, rtol=2e-2, atol=3e-2), max_err

    print("KERNEL_OK")
</pallas_src>

<mosaic_0001>
module attributes {stable_mosaic.version = 11 : i64} {
  func.func @_conv_bn_stats_kernel(%arg0: i32, %arg1: i32, %arg2: memref<1x8x9x16xbf16, #tpu.memory_space<vmem>>, %arg3: memref<1x1x9x16xbf16, #tpu.memory_space<vmem>>, %arg4: memref<4x16x128xbf16, #tpu.memory_space<vmem>>, %arg5: memref<1x128xf32, #tpu.memory_space<vmem>>, %arg6: memref<1x1x64x128xbf16, #tpu.memory_space<vmem>>, %arg7: memref<1x1x2x128xf32, #tpu.memory_space<vmem>>) attributes {dimension_semantics = [#tpu.dimension_semantics<parallel>, #tpu.dimension_semantics<parallel>], iteration_bounds = array<i64: 2, 1>, scalar_prefetch = 0 : i64, scratch_operands = 0 : i64, tpu.core_type = #tpu.core_type<tc>, window_params = [{transform_indices = @transform_0, window_bounds = array<i64: 1, 8, 9, 16>}, {transform_indices = @transform_1, window_bounds = array<i64: 1, 1, 9, 16>}, {pipeline_mode = #tpu.pipeline_mode<synchronous>, transform_indices = @transform_2, window_bounds = array<i64: 4, 16, 128>}, {pipeline_mode = #tpu.pipeline_mode<synchronous>, transform_indices = @transform_3, window_bounds = array<i64: 1, 128>}, {transform_indices = @transform_4, window_bounds = array<i64: 1, 1, 64, 128>}, {transform_indices = @transform_5, window_bounds = array<i64: 1, 1, 2, 128>}]} {
    %c0 = arith.constant 0 : index
    %c0_0 = arith.constant 0 : index
    %c0_1 = arith.constant 0 : index
    %c0_2 = arith.constant 0 : index
    %0 = vector.load %arg2[%c0, %c0_0, %c0_1, %c0_2] : memref<1x8x9x16xbf16, #tpu.memory_space<vmem>>, vector<1x8x8x16xbf16>
    %1 = vector.shape_cast %0 : vector<1x8x8x16xbf16> to vector<8x8x16xbf16>
    %2 = vector.shape_cast %1 : vector<8x8x16xbf16> to vector<64x16xbf16>
    %c0_3 = arith.constant 0 : index
    %c0_4 = arith.constant 0 : index
    %c1 = arith.constant 1 : index
    %c0_5 = arith.constant 0 : index
    %3 = vector.load %arg2[%c0_3, %c0_4, %c1, %c0_5] : memref<1x8x9x16xbf16, #tpu.memory_space<vmem>>, vector<1x8x8x16xbf16>
    %4 = vector.shape_cast %3 : vector<1x8x8x16xbf16> to vector<8x8x16xbf16>
    %5 = vector.shape_cast %4 : vector<8x8x16xbf16> to vector<64x16xbf16>
    %c0_6 = arith.constant 0 : index
    %c1_7 = arith.constant 1 : index
    %c0_8 = arith.constant 0 : index
    %c0_9 = arith.constant 0 : index
    %6 = vector.load %arg2[%c0_6, %c1_7, %c0_8, %c0_9] : memref<1x8x9x16xbf16, #tpu.memory_space<vmem>>, vector<1x7x9x16xbf16>
    %7 = vector.shape_cast %6 : vector<1x7x9x16xbf16> to vector<7x9x16xbf16>
    %c0_10 = arith.constant 0 : index
    %c0_11 = arith.constant 0 : index
    %c0_12 = arith.constant 0 : index
    %c0_13 = arith.constant 0 : index
    %8 = vector.load %arg3[%c0_10, %c0_11, %c0_12, %c0_13] : memref<1x1x9x16xbf16, #tpu.memory_space<vmem>>, vector<1x1x9x16xbf16>
    %9 = vector.shape_cast %8 : vector<1x1x9x16xbf16> to vector<1x9x16xbf16>
    %10 = tpu.concatenate %7, %9 in 0 : vector<7x9x16xbf16>, vector<1x9x16xbf16> -> vector<8x9x16xbf16>
    %11 = vector.extract_strided_slice %10 {offsets = [0, 0, 0], sizes = [8, 8, 16], strides = [1, 1, 1]} : vector<8x9x16xbf16> to vector<8x8x16xbf16>
    %12 = vector.shape_cast %11 : vector<8x8x16xbf16> to vector<64x16xbf16>
    %13 = vector.extract_strided_slice %10 {offsets = [0, 1, 0], sizes = [8, 8, 16], strides = [1, 1, 1]} : vector<8x9x16xbf16> to vector<8x8x16xbf16>
    %14 = vector.shape_cast %13 : vector<8x8x16xbf16> to vector<64x16xbf16>
    %c0_14 = arith.constant 0 : index
    %c0_15 = arith.constant 0 : index
    %c0_16 = arith.constant 0 : index
    %15 = vector.load %arg4[%c0_14, %c0_15, %c0_16] : memref<4x16x128xbf16, #tpu.memory_space<vmem>>, vector<1x16x128xbf16>
    %16 = vector.shape_cast %15 : vector<1x16x128xbf16> to vector<16x128xbf16>
    %cst = arith.constant dense<0.000000e+00> : vector<64x128xf32>
    %17 = tpu.matmul %2, %16, %cst {dimension_numbers = #tpu.dot_dimension_numbers<[1], [0], [0], [1], [0, 0, 1, 1], [], []>} : vector<64x16xbf16>, vector<16x128xbf16>, vector<64x128xf32> -> vector<64x128xf32>
    %c1_17 = arith.constant 1 : index
    %c0_18 = arith.constant 0 : index
    %c0_19 = arith.constant 0 : index
    %18 = vector.load %arg4[%c1_17, %c0_18, %c0_19] : memref<4x16x128xbf16, #tpu.memory_space<vmem>>, vector<1x16x128xbf16>
    %19 = vector.shape_cast %18 : vector<1x16x128xbf16> to vector<16x128xbf16>
    %cst_20 = arith.constant dense<0.000000e+00> : vector<64x128xf32>
    %20 = tpu.matmul %5, %19, %cst_20 {dimension_numbers = #tpu.dot_dimension_numbers<[1], [0], [0], [1], [0, 0, 1, 1], [], []>} : vector<64x16xbf16>, vector<16x128xbf16>, vector<64x128xf32> -> vector<64x128xf32>
    %21 = arith.addf %17, %20 : vector<64x128xf32>
    %c2 = arith.constant 2 : index
    %c0_21 = arith.constant 0 : index
    %c0_22 = arith.constant 0 : index
    %22 = vector.load %arg4[%c2, %c0_21, %c0_22] : memref<4x16x128xbf16, #tpu.memory_space<vmem>>, vector<1x16x128xbf16>
    %23 = vector.shape_cast %22 : vector<1x16x128xbf16> to vector<16x128xbf16>
    %cst_23 = arith.constant dense<0.000000e+00> : vector<64x128xf32>
    %24 = tpu.matmul %12, %23, %cst_23 {dimension_numbers = #tpu.dot_dimension_numbers<[1], [0], [0], [1], [0, 0, 1, 1], [], []>} : vector<64x16xbf16>, vector<16x128xbf16>, vector<64x128xf32> -> vector<64x128xf32>
    %25 = arith.addf %21, %24 : vector<64x128xf32>
    %c3 = arith.constant 3 : index
    %c0_24 = arith.constant 0 : index
    %c0_25 = arith.constant 0 : index
    %26 = vector.load %arg4[%c3, %c0_24, %c0_25] : memref<4x16x128xbf16, #tpu.memory_space<vmem>>, vector<1x16x128xbf16>
    %27 = vector.shape_cast %26 : vector<1x16x128xbf16> to vector<16x128xbf16>
    %cst_26 = arith.constant dense<0.000000e+00> : vector<64x128xf32>
    %28 = tpu.matmul %14, %27, %cst_26 {dimension_numbers = #tpu.dot_dimension_numbers<[1], [0], [0], [1], [0, 0, 1, 1], [], []>} : vector<64x16xbf16>, vector<16x128xbf16>, vector<64x128xf32> -> vector<64x128xf32>
    %29 = arith.addf %25, %28 : vector<64x128xf32>
    %c0_27 = arith.constant 0 : index
    %c0_28 = arith.constant 0 : index
    %30 = vector.load %arg5[%c0_27, %c0_28] : memref<1x128xf32, #tpu.memory_space<vmem>>, vector<1x128xf32>
    %31 = vector.broadcast %30 : vector<1x128xf32> to vector<64x128xf32>
    %32 = arith.addf %29, %31 : vector<64x128xf32>
    %cst_29 = arith.constant dense<0.000000e+00> : vector<128xf32>
    %33 = vector.multi_reduction <add>, %32, %cst_29 [0] : vector<64x128xf32> to vector<128xf32>
    %34 = vector.shape_cast %33 : vector<128xf32> to vector<1x128xf32>
    %c0_30 = arith.constant 0 : index
    %c0_31 = arith.constant 0 : index
    %c0_32 = arith.constant 0 : index
    %c0_33 = arith.constant 0 : index
    %35 = vector.load %arg7[%c0_30, %c0_31, %c0_32, %c0_33] : memref<1x1x2x128xf32, #tpu.memory_space<vmem>>, vector<1x1x1x128xf32>
    %36 = vector.shape_cast %35 : vector<1x1x1x128xf32> to vector<1x128xf32>
    %37 = vector.shape_cast %34 : vector<1x128xf32> to vector<1x1x1x128xf32>
    tpu.vector_store %arg7[%c0_30, %c0_31, %c0_32, %c0_33], %37 {strides = array<i32>} : memref<1x1x2x128xf32, #tpu.memory_space<vmem>>, vector<1x1x1x128xf32>,
    %38 = arith.mulf %32, %32 : vector<64x128xf32>
    %cst_34 = arith.constant dense<0.000000e+00> : vector<128xf32>
    %39 = vector.multi_reduction <add>, %38, %cst_34 [0] : vector<64x128xf32> to vector<128xf32>
    %40 = vector.shape_cast %39 : vector<128xf32> to vector<1x128xf32>
    %c0_35 = arith.constant 0 : index
    %c0_36 = arith.constant 0 : index
    %c1_37 = arith.constant 1 : index
    %c0_38 = arith.constant 0 : index
    %41 = vector.load %arg7[%c0_35, %c0_36, %c1_37, %c0_38] : memref<1x1x2x128xf32, #tpu.memory_space<vmem>>, vector<1x1x1x128xf32>
    %42 = vector.shape_cast %41 : vector<1x1x1x128xf32> to vector<1x128xf32>
    %43 = vector.shape_cast %40 : vector<1x128xf32> to vector<1x1x1x128xf32>
    tpu.vector_store %arg7[%c0_35, %c0_36, %c1_37, %c0_38], %43 {strides = array<i32>} : memref<1x1x2x128xf32, #tpu.memory_space<vmem>>, vector<1x1x1x128xf32>,
    %44 = arith.truncf %32 : vector<64x128xf32> to vector<64x128xbf16>
    %c0_39 = arith.constant 0 : index
    %c0_40 = arith.constant 0 : index
    %c0_41 = arith.constant 0 : index
    %c0_42 = arith.constant 0 : index
    %45 = vector.load %arg6[%c0_39, %c0_40, %c0_41, %c0_42] : memref<1x1x64x128xbf16, #tpu.memory_space<vmem>>, vector<1x1x64x128xbf16>
    %46 = vector.shape_cast %45 : vector<1x1x64x128xbf16> to vector<64x128xbf16>
    %47 = vector.shape_cast %44 : vector<64x128xbf16> to vector<1x1x64x128xbf16>
    tpu.vector_store %arg6[%c0_39, %c0_40, %c0_41, %c0_42], %47 {strides = array<i32>} : memref<1x1x64x128xbf16, #tpu.memory_space<vmem>>, vector<1x1x64x128xbf16>,
    return
  }
  func.func @transform_0(%arg0: i32, %arg1: i32) -> (i32, i32, i32, i32) {
    %c0_i32 = arith.constant 0 : i32
    %c0_i32_0 = arith.constant 0 : i32
    %c0_i32_1 = arith.constant 0 : i32
    return %arg0, %arg1, %c0_i32, %c0_i32_0 : i32, i32, i32, i32
  }
  func.func @transform_1(%arg0: i32, %arg1: i32) -> (i32, i32, i32, i32) {
    %c1_i32 = arith.constant 1 : i32
    %0 = arith.addi %arg1, %c1_i32 : i32
    %c8_i32 = arith.constant 8 : i32
    %1 = arith.muli %c8_i32, %0 : i32
    %c0_i32 = arith.constant 0 : i32
    %c0_i32_0 = arith.constant 0 : i32
    %c0_i32_1 = arith.constant 0 : i32
    return %arg0, %1, %c0_i32, %c0_i32_0 : i32, i32, i32, i32
  }
  func.func @transform_2(%arg0: i32, %arg1: i32) -> (i32, i32, i32) {
    %c0_i32 = arith.constant 0 : i32
    %c0_i32_0 = arith.constant 0 : i32
    %c0_i32_1 = arith.constant 0 : i32
    %c0_i32_2 = arith.constant 0 : i32
    return %c0_i32, %c0_i32_0, %c0_i32_1 : i32, i32, i32
  }
  func.func @transform_3(%arg0: i32, %arg1: i32) -> (i32, i32) {
    %c0_i32 = arith.constant 0 : i32
    %c0_i32_0 = arith.constant 0 : i32
    %c0_i32_1 = arith.constant 0 : i32
    return %c0_i32, %c0_i32_0 : i32, i32
  }
  func.func @transform_4(%arg0: i32, %arg1: i32) -> (i32, i32, i32, i32) {
    %c0_i32 = arith.constant 0 : i32
    %c0_i32_0 = arith.constant 0 : i32
    %c0_i32_1 = arith.constant 0 : i32
    return %arg0, %arg1, %c0_i32, %c0_i32_0 : i32, i32, i32, i32
  }
  func.func @transform_5(%arg0: i32, %arg1: i32) -> (i32, i32, i32, i32) {
    %c0_i32 = arith.constant 0 : i32
    %c0_i32_0 = arith.constant 0 : i32
    %c0_i32_1 = arith.constant 0 : i32
    return %arg0, %arg1, %c0_i32, %c0_i32_0 : i32, i32, i32, i32
  }
}

module attributes {stable_mosaic.version = 11 : i64} {
  func.func @_bn_lrelu_transpose_kernel(%arg0: i32, %arg1: i32, %arg2: memref<1x64x128xbf16, #tpu.memory_space<vmem>>, %arg3: memref<1x128xf32, #tpu.memory_space<vmem>>, %arg4: memref<1x128xf32, #tpu.memory_space<vmem>>, %arg5: memref<1x8x64xf32, #tpu.memory_space<vmem>>) attributes {dimension_semantics = [#tpu.dimension_semantics<parallel>, #tpu.dimension_semantics<parallel>], iteration_bounds = array<i64: 2, 1>, scalar_prefetch = 0 : i64, scratch_operands = 0 : i64, tpu.core_type = #tpu.core_type<tc>, window_params = [{transform_indices = @transform_0, window_bounds = array<i64: 1, 64, 128>}, {pipeline_mode = #tpu.pipeline_mode<synchronous>, transform_indices = @transform_1, window_bounds = array<i64: 1, 128>}, {pipeline_mode = #tpu.pipeline_mode<synchronous>, transform_indices = @transform_2, window_bounds = array<i64: 1, 128>}, {transform_indices = @transform_3, window_bounds = array<i64: 1, 8, 64>}]} {
    %c0 = arith.constant 0 : index
    %c0_0 = arith.constant 0 : index
    %c0_1 = arith.constant 0 : index
    %0 = vector.load %arg2[%c0, %c0_0, %c0_1] : memref<1x64x128xbf16, #tpu.memory_space<vmem>>, vector<1x64x128xbf16>
    %1 = vector.shape_cast %0 : vector<1x64x128xbf16> to vector<64x128xbf16>
    %2 = arith.extf %1 : vector<64x128xbf16> to vector<64x128xf32>
    %c0_2 = arith.constant 0 : index
    %c0_3 = arith.constant 0 : index
    %3 = vector.load %arg3[%c0_2, %c0_3] : memref<1x128xf32, #tpu.memory_space<vmem>>, vector<1x128xf32>
    %4 = vector.broadcast %3 : vector<1x128xf32> to vector<64x128xf32>
    %5 = arith.mulf %2, %4 : vector<64x128xf32>
    %c0_4 = arith.constant 0 : index
    %c0_5 = arith.constant 0 : index
    %6 = vector.load %arg4[%c0_4, %c0_5] : memref<1x128xf32, #tpu.memory_space<vmem>>, vector<1x128xf32>
    %7 = vector.broadcast %6 : vector<1x128xf32> to vector<64x128xf32>
    %8 = arith.addf %5, %7 : vector<64x128xf32>
    %cst = arith.constant 0.000000e+00 : f32
    %9 = vector.broadcast %cst : f32 to vector<64x128xf32>
    %10 = arith.cmpf oge, %8, %9 : vector<64x128xf32>
    %cst_6 = arith.constant 2.000000e-01 : f32
    %11 = vector.broadcast %cst_6 : f32 to vector<64x128xf32>
    %12 = arith.mulf %11, %8 : vector<64x128xf32>
    %13 = arith.select %10, %8, %12 : vector<64x128xi1>, vector<64x128xf32>
    %14 = tpu.transpose %13, [1, 0] : vector<64x128xf32> -> vector<128x64xf32>
    %15 = vector.extract_strided_slice %14 {offsets = [0, 0], sizes = [8, 64], strides = [1, 1]} : vector<128x64xf32> to vector<8x64xf32>
    %c0_7 = arith.constant 0 : index
    %c0_8 = arith.constant 0 : index
    %c0_9 = arith.constant 0 : index
    %16 = vector.load %arg5[%c0_7, %c0_8, %c0_9] : memref<1x8x64xf32, #tpu.memory_space<vmem>>, vector<1x8x64xf32>
    %17 = vector.shape_cast %16 : vector<1x8x64xf32> to vector<8x64xf32>
    %18 = vector.shape_cast %15 : vector<8x64xf32> to vector<1x8x64xf32>
    tpu.vector_store %arg5[%c0_7, %c0_8, %c0_9], %18 {strides = array<i32>} : memref<1x8x64xf32, #tpu.memory_space<vmem>>, vector<1x8x64xf32>,
    return
  }
  func.func @transform_0(%arg0: i32, %arg1: i32) -> (i32, i32, i32) {
    %c0_i32 = arith.constant 0 : i32
    %c0_i32_0 = arith.constant 0 : i32
    return %arg0, %arg1, %c0_i32 : i32, i32, i32
  }
  func.func @transform_1(%arg0: i32, %arg1: i32) -> (i32, i32) {
    %c0_i32 = arith.constant 0 : i32
    %c0_i32_0 = arith.constant 0 : i32
    %c0_i32_1 = arith.constant 0 : i32
    return %c0_i32, %c0_i32_0 : i32, i32
  }
  func.func @transform_2(%arg0: i32, %arg1: i32) -> (i32, i32) {
    %c0_i32 = arith.constant 0 : i32
    %c0_i32_0 = arith.constant 0 : i32
    %c0_i32_1 = arith.constant 0 : i32
    return %c0_i32, %c0_i32_0 : i32, i32
  }
  func.func @transform_3(%arg0: i32, %arg1: i32) -> (i32, i32, i32) {
    %c0_i32 = arith.constant 0 : i32
    %c0_i32_0 = arith.constant 0 : i32
    return %arg0, %c0_i32, %arg1 : i32, i32, i32
  }
}

</mosaic_0001>

<llo_original>
// kernel: conv_block_forward.3
$region0: #{conv_block_forward.3}
  #allocation0 [shape = 'u32[]', space=smem, size = 0x4, offset = 0x4, fixed_abs, tag = 'smem constant byte address 0x4 - core index']
  #allocation1 [shape = 'u32[72,128]{1,0:T(1,128)}', space=vmem, size = 0x9000, scoped, tag = 'internal scratch']
  %s0 = inlined_call_operand.vmem [shape: bf16[2,64,128], index: 0, kind: input, shape index: {}]
  %s1 = inlined_call_operand.vmem [shape: f32[1,128], index: 1, kind: input, shape index: {}]
  %s2 = inlined_call_operand.vmem [shape: f32[1,128], index: 2, kind: input, shape index: {}]
  %s3 = inlined_call_operand.vmem [shape: f32[2,8,64], index: 3, kind: output, shape index: {}]
  %s4 = sld [smem:[#allocation0]]
  $region45: #{conv_block_forward.3} parent=0
    _
  %s6 = ssub.s32 1, %s4
  %s7 = scalar_select 0, %s6, %s4
  loop: start=0, step=1, limit=4
  $region2: #{conv_block_forward.3} parent=0 // loop_pre_header
    _
  $region3: #{conv_block_forward.3} parent=0 // loop_header
    %s9 = sphi 0, %s13
    %p10 = scmp.ge.s32.totalorder %s9, 4
    %s16 = sphi 0, %s28
    %s17 = sphi 0, %s24
    %s18 = sphi 0, %s16
    %s19 = sphi 0, %s17
    %s20 = sphi 0, %s18
    %s21 = sphi 0, %s19
    %s33 = sphi 0, %s35
    %s36 = sphi 0, %s33
    %s37 = sphi 0, %s36
    %s53 = sphi 0, %s37
    %s57 = sphi 0, %s57
    %s59 = sphi 0, %s57
    %s60 = sphi 0, %s59
    %s74 = sphi 0, %s60
    %s78 = sphi 0, %s78
    %s80 = sphi 0, %s78
    %s81 = sphi 0, %s80
    %s95 = sphi 0, %s81
    %s103 = sphi 0, %s105
    %s106 = sphi 0, %s103
    %s107 = sphi 0, %s106
    %s123 = sphi 0, %s107
  $region4: #{conv_block_forward.3} parent=0 // loop_header_branch
    %12 = sbr.rel (%p10) target = $region8
  $region5: #{conv_block_forward.3} parent=0 // loop_body
    %s14 = ssub.s32 %s9, 1
    %s15 = ssub.s32 %s9, 2
    %s22 = sadd.s32 1, %s17
    %p23 = scmp.ge.s32.totalorder %s22, 1
    %s24 = scalar_select %p23, 0, %s22
    %s25 = sadd.s32 1, %s16
    %s26 = scalar_select %p23, %s25, %s16
    %p27 = scmp.ge.s32.totalorder %s26, 2
    %s28 = scalar_select %p27, 0, %s26
    %s29 = ssub.s32 %s16, %s28
    %s30 = ssub.s32 %s17, %s24
    %s31 = sor.u32 %s29, %s30
    %p32 = scmp.eq.s32.totalorder %s31, 0
    %s34 = sadd.s32 %s33, 1
    %s35 = scalar_select %p32, %s33, %s34
    %p38 = pneg %p32
    %p39 = scmp.eq.s32.totalorder %s9, 1
    %p40 = por %p38, %p39
    %p41 = scmp.ne.s32.totalorder %s33, %s36
    %p42 = scmp.eq.s32.totalorder %s9, 0
    %p43 = por %p41, %p42
    %p44 = scmp.ne.s32.totalorder %s33, %s36
    %p45 = scmp.eq.s32.totalorder %s14, 1
    %p46 = por %p44, %p45
    %p47 = scmp.ne.s32.totalorder %s36, %s37
    %p48 = scmp.eq.s32.totalorder %s14, 0
    %p49 = por %p47, %p48
    %p50 = scmp.ne.s32.totalorder %s36, %s37
    %p51 = scmp.eq.s32.totalorder %s15, 1
    %p52 = por %p50, %p51
    %p54 = scmp.ne.s32.totalorder %s37, %s53
    %p55 = scmp.eq.s32.totalorder %s15, 0
    %p56 = por %p54, %p55
    %s58 = sadd.s32 %s57, 1
    %p61 = scmp.eq.s32.totalorder %s9, 1
    %p62 = scmp.ne.s32.totalorder %s57, %s59
    %p63 = scmp.eq.s32.totalorder %s9, 0
    %p64 = por %p62, %p63
    %p65 = scmp.ne.s32.totalorder %s57, %s59
    %p66 = scmp.eq.s32.totalorder %s14, 1
    %p67 = por %p65, %p66
    %p68 = scmp.ne.s32.totalorder %s59, %s60
    %p69 = scmp.eq.s32.totalorder %s14, 0
    %p70 = por %p68, %p69
    %p71 = scmp.ne.s32.totalorder %s59, %s60
    %p72 = scmp.eq.s32.totalorder %s15, 1
    %p73 = por %p71, %p72
    %p75 = scmp.ne.s32.totalorder %s60, %s74
    %p76 = scmp.eq.s32.totalorder %s15, 0
    %p77 = por %p75, %p76
    %s79 = sadd.s32 %s78, 1
    %p82 = scmp.eq.s32.totalorder %s9, 1
    %p83 = scmp.ne.s32.totalorder %s78, %s80
    %p84 = scmp.eq.s32.totalorder %s9, 0
    %p85 = por %p83, %p84
    %p86 = scmp.ne.s32.totalorder %s78, %s80
    %p87 = scmp.eq.s32.totalorder %s14, 1
    %p88 = por %p86, %p87
    %p89 = scmp.ne.s32.totalorder %s80, %s81
    %p90 = scmp.eq.s32.totalorder %s14, 0
    %p91 = por %p89, %p90
    %p92 = scmp.ne.s32.totalorder %s80, %s81
    %p93 = scmp.eq.s32.totalorder %s15, 1
    %p94 = por %p92, %p93
    %p96 = scmp.ne.s32.totalorder %s81, %s95
    %p97 = scmp.eq.s32.totalorder %s15, 0
    %p98 = por %p96, %p97
    %s99 = ssub.s32 %s16, %s28
    %s100 = ssub.s32 %s17, %s24
    %s101 = sor.u32 %s99, %s100
    %p102 = scmp.eq.s32.totalorder %s101, 0
    %s104 = sadd.s32 %s103, 1
    %s105 = scalar_select %p102, %s103, %s104
    %p108 = pneg %p102
    %p109 = scmp.eq.s32.totalorder %s9, 1
    %p110 = por %p108, %p109
    %p111 = scmp.ne.s32.totalorder %s103, %s106
    %p112 = scmp.eq.s32.totalorder %s9, 0
    %p113 = por %p111, %p112
    %p114 = scmp.ne.s32.totalorder %s103, %s106
    %p115 = scmp.eq.s32.totalorder %s14, 1
    %p116 = por %p114, %p115
    %p117 = scmp.ne.s32.totalorder %s106, %s107
    %p118 = scmp.eq.s32.totalorder %s14, 0
    %p119 = por %p117, %p118
    %p120 = scmp.ne.s32.totalorder %s106, %s107
    %p121 = scmp.eq.s32.totalorder %s15, 1
    %p122 = por %p120, %p121
    %p124 = scmp.ne.s32.totalorder %s107, %s123
    %p125 = scmp.eq.s32.totalorder %s15, 0
    %p126 = por %p124, %p125
    %p127 = scmp.le.s32.totalorder 1, %s9
    %p128 = scmp.lt.s32.totalorder %s9, 3
    %p129 = pnand %p127, %p128
    %p130 = pneg %p129
    // Predicated region
    $region9: #{conv_block_forward.3} parent=5 // pred_check
      _
    $region10: #{conv_block_forward.3} parent=5 // pred_check_branch
      %132 = sbr.rel (%p129) target = $region12
    $region11: #{conv_block_forward.3} parent=5 // pred_region
      %s133 = ssub.s32 %s9, 1
      // Predicated region
      $region13: #{conv_block_forward.3} parent=11 // pred_check
        %p134 = pneg %p70
      $region14: #{conv_block_forward.3} parent=11 // pred_check_branch
        %136 = sbr.rel (%p134) target = $region16
      $region15: #{conv_block_forward.3} parent=11 // pred_region
        _
      $region16: #{conv_block_forward.3} parent=11 // pred_fallthru
        _
      // Predicated region
      $region17: #{conv_block_forward.3} parent=11 // pred_check
        %p137 = pneg %p91
      $region18: #{conv_block_forward.3} parent=11 // pred_check_branch
        %139 = sbr.rel (%p137) target = $region20
      $region19: #{conv_block_forward.3} parent=11 // pred_region
        _
      $region20: #{conv_block_forward.3} parent=11 // pred_fallthru
        _
    $region12: #{conv_block_forward.3} parent=5 // pred_fallthru
      _
    %p140 = scmp.lt.s32.totalorder %s9, 2
    // Predicated region
    $region21: #{conv_block_forward.3} parent=5 // pred_check
      %p141 = pneg %p140
    $region22: #{conv_block_forward.3} parent=5 // pred_check_branch
      %143 = sbr.rel (%p141) target = $region24
    $region23: #{conv_block_forward.3} parent=5 // pred_region
      // Predicated region
      $region25: #{conv_block_forward.3} parent=23 // pred_check
        %p144 = pneg %p43
      $region26: #{conv_block_forward.3} parent=23 // pred_check_branch
        %146 = sbr.rel (%p144) target = $region28
      $region27: #{conv_block_forward.3} parent=23 // pred_region
        %s147 = smul.u32 8, %s17
        %p148 = scmp.lt.s32.totalorder %s16, 1
        %s149 = scalar_select %p148, %s16, 1
        %p150 = scmp.lt.s32.totalorder %s147, 7
        %s151 = scalar_select %p150, %s147, 7
        %s152 = smul.addr %s149, 8
        %s153 = sadd.s32 %s151, %s152
        %s154 = smul.addr %s153, 4
        %s155 = scalar_lea.vmem %s0, %s154
        %s156 = smul.u32 8, %s17
      $region28: #{conv_block_forward.3} parent=23 // pred_fallthru
        _
    $region24: #{conv_block_forward.3} parent=5 // pred_fallthru
      _
    %p157 = scmp.le.s32.totalorder 1, %s9
    %p158 = scmp.lt.s32.totalorder %s9, 3
    %p159 = pnand %p157, %p158
    %p160 = pneg %p159
    // Predicated region
    $region29: #{conv_block_forward.3} parent=5 // pred_check
      _
    $region30: #{conv_block_forward.3} parent=5 // pred_check_branch
      %162 = sbr.rel (%p159) target = $region32
    $region31: #{conv_block_forward.3} parent=5 // pred_region
      %s163 = ssub.s32 %s9, 1
      %s164 = smul.u32 8, %s19
      %p165 = scmp.lt.s32.totalorder %s18, 1
      %s166 = scalar_select %p165, %s18, 1
      %p167 = scmp.lt.s32.totalorder %s164, 7
      %s168 = scalar_select %p167, %s164, 7
      %s169 = smul.addr %s166, 8
      %s170 = sadd.s32 %s168, %s169
      %s171 = smul.addr %s170, 4
      %s172 = scalar_lea.vmem %s0, %s171
      %p173 = pneg %p49
      %p174 = pneg %p46
      %p175 = pneg %p70
      %p176 = pneg %p67
      %p177 = pneg %p91
      %p178 = pneg %p88
      %p179 = pneg %p119
      %p180 = pneg %p116
      %p181 = scmp.lt.s32.totalorder %s18, 1
      %s182 = scalar_select %p181, %s18, 1
      %p183 = scmp.lt.s32.totalorder %s19, 0
      %s184 = scalar_select %p183, %s19, 0
      %s185 = sadd.s32 %s184, %s182
      %s186 = smul.addr %s185, 8
      %s187 = scalar_lea.vmem %s3, %s186
      %s188 = smul.u32 8, %s19
      %p189 = scmp.lt.s32.totalorder %s18, 1
      %s190 = scalar_select %p189, %s18, 1
      %p191 = scmp.lt.s32.totalorder %s188, 7
      %s192 = scalar_select %p191, %s188, 7
      %s193 = smul.addr %s190, 8
      %s194 = sadd.s32 %s192, %s193
      %s195 = smul.addr %s194, 4
      %s196 = scalar_lea.vmem %s0, %s195
      %s197 = smul.u32 8, %s19
      %p198 = scmp.lt.s32.totalorder %s18, 1
      %s199 = scalar_select %p198, %s18, 1
      %p200 = scmp.lt.s32.totalorder %s19, 0
      %s201 = scalar_select %p200, %s19, 0
      %s202 = sadd.s32 %s201, %s199
      %s203 = smul.addr %s202, 8
      %s204 = scalar_lea.vmem %s3, %s203
      %v205 = vld [vmem:[%s196] sm:$0xf]
      %v206 = vld [vmem:[%s196 + $0x4] sm:$0xf]
      %v207 = vld [vmem:[%s196 + $0x8] sm:$0xf]
      %v208 = vld [vmem:[%s196 + $0xc] sm:$0xf]
      %v209 = vld [vmem:[%s196 + $0x10] sm:$0xf]
      %v210 = vld [vmem:[%s196 + $0x14] sm:$0xf]
      %v211 = vld [vmem:[%s196 + $0x18] sm:$0xf]
      %v212 = vld [vmem:[%s196 + $0x1c] sm:$0xf]
      %v213 = vunpack.c.l.bf16 %v205
      %v214 = vunpack.c.l.bf16 %v206
      %v215 = vunpack.c.l.bf16 %v207
      %v216 = vunpack.c.l.bf16 %v208
      %v217 = vunpack.c.l.bf16 %v209
      %v218 = vunpack.c.l.bf16 %v210
      %v219 = vunpack.c.l.bf16 %v211
      %v220 = vunpack.c.l.bf16 %v212
      %v221 = vld [vmem:[%s1] sm:$0x1]
      %v223 = vperm.slane %v221, 0
      %v225 = vmul.f32 %v213, %v223
      %v226 = vmul.f32 %v214, %v223
      %v227 = vmul.f32 %v215, %v223
      %v228 = vmul.f32 %v216, %v223
      %v229 = vmul.f32 %v217, %v223
      %v230 = vmul.f32 %v218, %v223
      %v231 = vmul.f32 %v219, %v223
      %v232 = vmul.f32 %v220, %v223
      %v233 = vld [vmem:[%s2] sm:$0x1]
      %v235 = vperm.slane %v233, 0
      %v237 = vadd.f32 %v225, %v235
      %v238 = vadd.f32 %v226, %v235
      %v239 = vadd.f32 %v227, %v235
      %v240 = vadd.f32 %v228, %v235
      %v241 = vadd.f32 %v229, %v235
      %v242 = vadd.f32 %v230, %v235
      %v243 = vadd.f32 %v231, %v235
      %v244 = vadd.f32 %v232, %v235
      %vm245 = vcmp.ge.f32.partialorder %v237, 0.0
      %vm246 = vcmp.ge.f32.partialorder %v238, 0.0
      %vm247 = vcmp.ge.f32.partialorder %v239, 0.0
      %vm248 = vcmp.ge.f32.partialorder %v240, 0.0
      %vm249 = vcmp.ge.f32.partialorder %v241, 0.0
      %vm250 = vcmp.ge.f32.partialorder %v242, 0.0
      %vm251 = vcmp.ge.f32.partialorder %v243, 0.0
      %vm252 = vcmp.ge.f32.partialorder %v244, 0.0
      %v253 = vmul.f32 %v237, 0.2
      %v254 = vmul.f32 %v238, 0.2
      %v255 = vmul.f32 %v239, 0.2
      %v256 = vmul.f32 %v240, 0.2
      %v257 = vmul.f32 %v241, 0.2
      %v258 = vmul.f32 %v242, 0.2
      %v259 = vmul.f32 %v243, 0.2
      %v260 = vmul.f32 %v244, 0.2
      %v261 = vsel %vm245, %v237, %v253
      %v262 = vsel %vm246, %v238, %v254
      %v263 = vsel %vm247, %v239, %v255
      %v264 = vsel %vm248, %v240, %v256
      %v265 = vsel %vm249, %v241, %v257
      %v266 = vsel %vm250, %v242, %v258
      %v267 = vsel %vm251, %v243, %v259
      %v268 = vsel %vm252, %v244, %v260
      %269 = vxpose.xlu0.b32.start [1/16] %v261, 128
      %270 = vxpose.xlu0.b32.cont [2/16] %v262, 128
      %271 = vxpose.xlu0.b32.cont [3/16] %v263, 128
      %272 = vxpose.xlu0.b32.cont [4/16] %v264, 128
      %273 = vxpose.xlu0.b32.cont [5/16] %v265, 128
      %274 = vxpose.xlu0.b32.cont [6/16] %v266, 128
      %275 = vxpose.xlu0.b32.cont [7/16] %v267, 128
      %276 = vxpose.xlu0.b32.cont [8/16] %v268, 128
      %277 = vxpose.xlu0.b32.cont [9/16] 0.0, 128
      %278 = vxpose.xlu0.b32.cont [10/16] 0.0, 128
      %279 = vxpose.xlu0.b32.cont [11/16] 0.0, 128
      %280 = vxpose.xlu0.b32.cont [12/16] 0.0, 128
      %281 = vxpose.xlu0.b32.cont [13/16] 0.0, 128
      %282 = vxpose.xlu0.b32.cont [14/16] 0.0, 128
      %283 = vxpose.xlu0.b32.cont [15/16] 0.0, 128
      %284 = vxpose.xlu0.b32.end [16/16] 0.0, 128
      %v285 = vpop.trf.xlu0
      %v286 = vpop.trf.xlu0
      %v287 = vpop.trf.xlu0
      %v288 = vpop.trf.xlu0
      %v289 = vpop.trf.xlu0
      %v290 = vpop.trf.xlu0
      %v291 = vpop.trf.xlu0
      %v292 = vpop.trf.xlu0
      %v293 = vpop.trf.xlu0
      %v294 = vpop.trf.xlu0
      %v295 = vpop.trf.xlu0
      %v296 = vpop.trf.xlu0
      %v297 = vpop.trf.xlu0
      %v298 = vpop.trf.xlu0
      %v299 = vpop.trf.xlu0
      %v300 = vpop.trf.xlu0
      %vm301 = vcmask 523264
      %302 = vst.msk [vmem:[%s204] sm:$0xff] %vm301, %v285
      %p303 = scmp.lt.s32.totalorder %s18, 1
      %s304 = scalar_select %p303, %s18, 1
      %p305 = scmp.lt.s32.totalorder %s19, 0
      %s306 = scalar_select %p305, %s19, 0
      %s307 = sadd.s32 %s306, %s304
      %s308 = smul.addr %s307, 8
      %s309 = scalar_lea.vmem %s3, %s308
      // Predicated region
      $region33: #{conv_block_forward.3} parent=31 // pred_check
        %p310 = pneg %p116
      $region34: #{conv_block_forward.3} parent=31 // pred_check_branch
        %312 = sbr.rel (%p310) target = $region36
      $region35: #{conv_block_forward.3} parent=31 // pred_region
        _
      $region36: #{conv_block_forward.3} parent=31 // pred_fallthru
        _
    $region32: #{conv_block_forward.3} parent=5 // pred_fallthru
      _
    %p313 = scmp.le.s32.totalorder 2, %s9
    // Predicated region
    $region37: #{conv_block_forward.3} parent=5 // pred_check
      %p314 = pneg %p313
    $region38: #{conv_block_forward.3} parent=5 // pred_check_branch
      %316 = sbr.rel (%p314) target = $region40
    $region39: #{conv_block_forward.3} parent=5 // pred_region
      %s317 = ssub.s32 %s9, 2
      // Predicated region
      $region41: #{conv_block_forward.3} parent=39 // pred_check
        %p318 = pneg %p122
      $region42: #{conv_block_forward.3} parent=39 // pred_check_branch
        %320 = sbr.rel (%p318) target = $region44
      $region43: #{conv_block_forward.3} parent=39 // pred_region
        %p321 = scmp.lt.s32.totalorder %s20, 1
        %s322 = scalar_select %p321, %s20, 1
        %p323 = scmp.lt.s32.totalorder %s21, 0
        %s324 = scalar_select %p323, %s21, 0
        %s325 = sadd.s32 %s324, %s322
        %s326 = smul.addr %s325, 8
        %s327 = scalar_lea.vmem %s3, %s326
      $region44: #{conv_block_forward.3} parent=39 // pred_fallthru
        _
    $region40: #{conv_block_forward.3} parent=5 // pred_fallthru
      _
  $region6: #{conv_block_forward.3} parent=0 // loop_footer
    %s13 = sadd.s32 1, %s9
  $region7: #{conv_block_forward.3} parent=0 // loop_footer_branch
    %8 = sbr.rel target = $region3
  $region8: #{conv_block_forward.3} parent=0 // loop_exit
    _

// kernel: conv_block_forward.2
$region0: #{conv_block_forward.2}
  #allocation0 [shape = 'u32[]', space=smem, size = 0x4, offset = 0x4, fixed_abs, tag = 'smem constant byte address 0x4 - core index']
  #allocation1 [shape = 'u32[72,128]{1,0:T(1,128)}', space=vmem, size = 0x9000, scoped, tag = 'internal scratch']
  %s0 = inlined_call_operand.vmem [shape: bf16[2,9,9,16], index: 0, kind: input, shape index: {}, may-alias: {0,1}]
  %s1 = inlined_call_operand.vmem [shape: bf16[2,9,9,16], index: 1, kind: input, shape index: {}, may-alias: {0,1}]
  %s2 = inlined_call_operand.vmem [shape: bf16[4,16,128], index: 2, kind: input, shape index: {}]
  %s3 = inlined_call_operand.vmem [shape: f32[1,128], index: 3, kind: input, shape index: {}]
  %s4 = inlined_call_operand.vmem [shape: bf16[2,1,64,128], index: 4, kind: output, shape index: {0}]
  %s5 = inlined_call_operand.vmem [shape: f32[2,1,2,128], index: 5, kind: output, shape index: {1}]
  %6 = xla_tuple %s4, %s5
  %s7 = sld [smem:[#allocation0]]
  $region57: #{conv_block_forward.2} parent=0
    _
  %s9 = ssub.s32 1, %s7
  %s10 = scalar_select 0, %s9, %s7
  loop: start=0, step=1, limit=4
  $region2: #{conv_block_forward.2} parent=0 // loop_pre_header
    _
  $region3: #{conv_block_forward.2} parent=0 // loop_header
    %s12 = sphi 0, %s16
    %p13 = scmp.ge.s32.totalorder %s12, 4
    %s19 = sphi 0, %s31
    %s20 = sphi 0, %s27
    %s21 = sphi 0, %s19
    %s22 = sphi 0, %s20
    %s23 = sphi 0, %s21
    %s24 = sphi 0, %s22
    %s36 = sphi 0, %s38
    %s39 = sphi 0, %s36
    %s40 = sphi 0, %s39
    %s56 = sphi 0, %s40
    %s68 = sphi 0, %s70
    %s71 = sphi 0, %s68
    %s72 = sphi 0, %s71
    %s88 = sphi 0, %s72
    %s92 = sphi 0, %s92
    %s94 = sphi 0, %s92
    %s95 = sphi 0, %s94
    %s109 = sphi 0, %s95
    %s113 = sphi 0, %s113
    %s115 = sphi 0, %s113
    %s116 = sphi 0, %s115
    %s130 = sphi 0, %s116
    %s138 = sphi 0, %s140
    %s141 = sphi 0, %s138
    %s142 = sphi 0, %s141
    %s158 = sphi 0, %s142
    %s166 = sphi 0, %s168
    %s169 = sphi 0, %s166
    %s170 = sphi 0, %s169
    %s186 = sphi 0, %s170
  $region4: #{conv_block_forward.2} parent=0 // loop_header_branch
    %15 = sbr.rel (%p13) target = $region8
  $region5: #{conv_block_forward.2} parent=0 // loop_body
    %s17 = ssub.s32 %s12, 1
    %s18 = ssub.s32 %s12, 2
    %s25 = sadd.s32 1, %s20
    %p26 = scmp.ge.s32.totalorder %s25, 1
    %s27 = scalar_select %p26, 0, %s25
    %s28 = sadd.s32 1, %s19
    %s29 = scalar_select %p26, %s28, %s19
    %p30 = scmp.ge.s32.totalorder %s29, 2
    %s31 = scalar_select %p30, 0, %s29
    %s32 = ssub.s32 %s19, %s31
    %s33 = ssub.s32 %s20, %s27
    %s34 = sor.u32 %s32, %s33
    %p35 = scmp.eq.s32.totalorder %s34, 0
    %s37 = sadd.s32 %s36, 1
    %s38 = scalar_select %p35, %s36, %s37
    %p41 = pneg %p35
    %p42 = scmp.eq.s32.totalorder %s12, 1
    %p43 = por %p41, %p42
    %p44 = scmp.ne.s32.totalorder %s36, %s39
    %p45 = scmp.eq.s32.totalorder %s12, 0
    %p46 = por %p44, %p45
    %p47 = scmp.ne.s32.totalorder %s36, %s39
    %p48 = scmp.eq.s32.totalorder %s17, 1
    %p49 = por %p47, %p48
    %p50 = scmp.ne.s32.totalorder %s39, %s40
    %p51 = scmp.eq.s32.totalorder %s17, 0
    %p52 = por %p50, %p51
    %p53 = scmp.ne.s32.totalorder %s39, %s40
    %p54 = scmp.eq.s32.totalorder %s18, 1
    %p55 = por %p53, %p54
    %p57 = scmp.ne.s32.totalorder %s40, %s56
    %p58 = scmp.eq.s32.totalorder %s18, 0
    %p59 = por %p57, %p58
    %s60 = sadd.s32 %s20, 1
    %s61 = smul.u32 %s60, 8
    %s62 = sadd.s32 %s27, 1
    %s63 = smul.u32 %s62, 8
    %s64 = ssub.s32 %s19, %s31
    %s65 = ssub.s32 %s61, %s63
    %s66 = sor.u32 %s64, %s65
    %p67 = scmp.eq.s32.totalorder %s66, 0
    %s69 = sadd.s32 %s68, 1
    %s70 = scalar_select %p67, %s68, %s69
    %p73 = pneg %p67
    %p74 = scmp.eq.s32.totalorder %s12, 1
    %p75 = por %p73, %p74
    %p76 = scmp.ne.s32.totalorder %s68, %s71
    %p77 = scmp.eq.s32.totalorder %s12, 0
    %p78 = por %p76, %p77
    %p79 = scmp.ne.s32.totalorder %s68, %s71
    %p80 = scmp.eq.s32.totalorder %s17, 1
    %p81 = por %p79, %p80
    %p82 = scmp.ne.s32.totalorder %s71, %s72
    %p83 = scmp.eq.s32.totalorder %s17, 0
    %p84 = por %p82, %p83
    %p85 = scmp.ne.s32.totalorder %s71, %s72
    %p86 = scmp.eq.s32.totalorder %s18, 1
    %p87 = por %p85, %p86
    %p89 = scmp.ne.s32.totalorder %s72, %s88
    %p90 = scmp.eq.s32.totalorder %s18, 0
    %p91 = por %p89, %p90
    %s93 = sadd.s32 %s92, 1
    %p96 = scmp.eq.s32.totalorder %s12, 1
    %p97 = scmp.ne.s32.totalorder %s92, %s94
    %p98 = scmp.eq.s32.totalorder %s12, 0
    %p99 = por %p97, %p98
    %p100 = scmp.ne.s32.totalorder %s92, %s94
    %p101 = scmp.eq.s32.totalorder %s17, 1
    %p102 = por %p100, %p101
    %p103 = scmp.ne.s32.totalorder %s94, %s95
    %p104 = scmp.eq.s32.totalorder %s17, 0
    %p105 = por %p103, %p104
    %p106 = scmp.ne.s32.totalorder %s94, %s95
    %p107 = scmp.eq.s32.totalorder %s18, 1
    %p108 = por %p106, %p107
    %p110 = scmp.ne.s32.totalorder %s95, %s109
    %p111 = scmp.eq.s32.totalorder %s18, 0
    %p112 = por %p110, %p111
    %s114 = sadd.s32 %s113, 1
    %p117 = scmp.eq.s32.totalorder %s12, 1
    %p118 = scmp.ne.s32.totalorder %s113, %s115
    %p119 = scmp.eq.s32.totalorder %s12, 0
    %p120 = por %p118, %p119
    %p121 = scmp.ne.s32.totalorder %s113, %s115
    %p122 = scmp.eq.s32.totalorder %s17, 1
    %p123 = por %p121, %p122
    %p124 = scmp.ne.s32.totalorder %s115, %s116
    %p125 = scmp.eq.s32.totalorder %s17, 0
    %p126 = por %p124, %p125
    %p127 = scmp.ne.s32.totalorder %s115, %s116
    %p128 = scmp.eq.s32.totalorder %s18, 1
    %p129 = por %p127, %p128
    %p131 = scmp.ne.s32.totalorder %s116, %s130
    %p132 = scmp.eq.s32.totalorder %s18, 0
    %p133 = por %p131, %p132
    %s134 = ssub.s32 %s19, %s31
    %s135 = ssub.s32 %s20, %s27
    %s136 = sor.u32 %s134, %s135
    %p137 = scmp.eq.s32.totalorder %s136, 0
    %s139 = sadd.s32 %s138, 1
    %s140 = scalar_select %p137, %s138, %s139
    %p143 = pneg %p137
    %p144 = scmp.eq.s32.totalorder %s12, 1
    %p145 = por %p143, %p144
    %p146 = scmp.ne.s32.totalorder %s138, %s141
    %p147 = scmp.eq.s32.totalorder %s12, 0
    %p148 = por %p146, %p147
    %p149 = scmp.ne.s32.totalorder %s138, %s141
    %p150 = scmp.eq.s32.totalorder %s17, 1
    %p151 = por %p149, %p150
    %p152 = scmp.ne.s32.totalorder %s141, %s142
    %p153 = scmp.eq.s32.totalorder %s17, 0
    %p154 = por %p152, %p153
    %p155 = scmp.ne.s32.totalorder %s141, %s142
    %p156 = scmp.eq.s32.totalorder %s18, 1
    %p157 = por %p155, %p156
    %p159 = scmp.ne.s32.totalorder %s142, %s158
    %p160 = scmp.eq.s32.totalorder %s18, 0
    %p161 = por %p159, %p160
    %s162 = ssub.s32 %s19, %s31
    %s163 = ssub.s32 %s20, %s27
    %s164 = sor.u32 %s162, %s163
    %p165 = scmp.eq.s32.totalorder %s164, 0
    %s167 = sadd.s32 %s166, 1
    %s168 = scalar_select %p165, %s166, %s167
    %p171 = pneg %p165
    %p172 = scmp.eq.s32.totalorder %s12, 1
    %p173 = por %p171, %p172
    %p174 = scmp.ne.s32.totalorder %s166, %s169
    %p175 = scmp.eq.s32.totalorder %s12, 0
    %p176 = por %p174, %p175
    %p177 = scmp.ne.s32.totalorder %s166, %s169
    %p178 = scmp.eq.s32.totalorder %s17, 1
    %p179 = por %p177, %p178
    %p180 = scmp.ne.s32.totalorder %s169, %s170
    %p181 = scmp.eq.s32.totalorder %s17, 0
    %p182 = por %p180, %p181
    %p183 = scmp.ne.s32.totalorder %s169, %s170
    %p184 = scmp.eq.s32.totalorder %s18, 1
    %p185 = por %p183, %p184
    %p187 = scmp.ne.s32.totalorder %s170, %s186
    %p188 = scmp.eq.s32.totalorder %s18, 0
    %p189 = por %p187, %p188
    %p190 = scmp.le.s32.totalorder 1, %s12
    %p191 = scmp.lt.s32.totalorder %s12, 3
    %p192 = pnand %p190, %p191
    %p193 = pneg %p192
    // Predicated region
    $region9: #{conv_block_forward.2} parent=5 // pred_check
      _
    $region10: #{conv_block_forward.2} parent=5 // pred_check_branch
      %195 = sbr.rel (%p192) target = $region12
    $region11: #{conv_block_forward.2} parent=5 // pred_region
      %s196 = ssub.s32 %s12, 1
      // Predicated region
      $region13: #{conv_block_forward.2} parent=11 // pred_check
        %p197 = pneg %p105
      $region14: #{conv_block_forward.2} parent=11 // pred_check_branch
        %199 = sbr.rel (%p197) target = $region16
      $region15: #{conv_block_forward.2} parent=11 // pred_region
        _
      $region16: #{conv_block_forward.2} parent=11 // pred_fallthru
        _
      // Predicated region
      $region17: #{conv_block_forward.2} parent=11 // pred_check
        %p200 = pneg %p126
      $region18: #{conv_block_forward.2} parent=11 // pred_check_branch
        %202 = sbr.rel (%p200) target = $region20
      $region19: #{conv_block_forward.2} parent=11 // pred_region
        _
      $region20: #{conv_block_forward.2} parent=11 // pred_fallthru
        _
    $region12: #{conv_block_forward.2} parent=5 // pred_fallthru
      _
    %p203 = scmp.lt.s32.totalorder %s12, 2
    // Predicated region
    $region21: #{conv_block_forward.2} parent=5 // pred_check
      %p204 = pneg %p203
    $region22: #{conv_block_forward.2} parent=5 // pred_check_branch
      %206 = sbr.rel (%p204) target = $region24
    $region23: #{conv_block_forward.2} parent=5 // pred_region
      // Predicated region
      $region25: #{conv_block_forward.2} parent=23 // pred_check
        %p207 = pneg %p46
      $region26: #{conv_block_forward.2} parent=23 // pred_check_branch
        %209 = sbr.rel (%p207) target = $region28
      $region27: #{conv_block_forward.2} parent=23 // pred_region
        %s210 = smul.u32 8, %s20
        %s211 = ssub.s32 9, %s210
        %p212 = scmp.lt.s32.totalorder %s211, 8
        %s213 = scalar_select %p212, %s211, 8
        %s214 = smul.u32 4, %s213
        %s215 = smul.u32 %s214, 2
        %p216 = scmp.lt.s32.totalorder %s19, 1
        %s217 = scalar_select %p216, %s19, 1
        %p218 = scmp.lt.s32.totalorder %s210, 8
        %s219 = scalar_select %p218, %s210, 8
        %s220 = smul.addr %s219, 2
        %s221 = smul.addr %s217, 18
        %s222 = sadd.s32 %s220, %s221
        %s223 = smul.addr %s222, 4
        %s224 = scalar_lea.vmem %s0, %s223
        %s225 = smul.u32 8, %s20
        %s226 = ssub.s32 9, %s225
        %p227 = scmp.lt.s32.totalorder %s226, 8
        %s228 = scalar_select %p227, %s226, 8
        %s229 = smul.u32 4, %s228
        %s230 = smul.u32 %s229, 2
      $region28: #{conv_block_forward.2} parent=23 // pred_fallthru
        _
      // Predicated region
      $region29: #{conv_block_forward.2} parent=23 // pred_check
        %p231 = pneg %p78
      $region30: #{conv_block_forward.2} parent=23 // pred_check_branch
        %233 = sbr.rel (%p231) target = $region32
      $region31: #{conv_block_forward.2} parent=23 // pred_region
        %s234 = sadd.s32 %s20, 1
        %s235 = smul.u32 %s234, 8
        %p236 = scmp.lt.s32.totalorder %s19, 1
        %s237 = scalar_select %p236, %s19, 1
        %p238 = scmp.lt.s32.totalorder %s235, 8
        %s239 = scalar_select %p238, %s235, 8
        %s240 = smul.addr %s239, 2
        %s241 = smul.addr %s237, 18
        %s242 = sadd.s32 %s240, %s241
        %s243 = smul.addr %s242, 4
        %s244 = scalar_lea.vmem %s1, %s243
        %s245 = sadd.s32 %s20, 1
        %s246 = smul.u32 %s245, 8
      $region32: #{conv_block_forward.2} parent=23 // pred_fallthru
        _
    $region24: #{conv_block_forward.2} parent=5 // pred_fallthru
      _
    %p247 = scmp.le.s32.totalorder 1, %s12
    %p248 = scmp.lt.s32.totalorder %s12, 3
    %p249 = pnand %p247, %p248
    %p250 = pneg %p249
    // Predicated region
    $region33: #{conv_block_forward.2} parent=5 // pred_check
      _
    $region34: #{conv_block_forward.2} parent=5 // pred_check_branch
      %252 = sbr.rel (%p249) target = $region36
    $region35: #{conv_block_forward.2} parent=5 // pred_region
      %s253 = ssub.s32 %s12, 1
      %s254 = smul.u32 8, %s22
      %s255 = ssub.s32 9, %s254
      %p256 = scmp.lt.s32.totalorder %s255, 8
      %s257 = scalar_select %p256, %s255, 8
      %s258 = smul.u32 4, %s257
      %s259 = smul.u32 %s258, 2
      %p260 = scmp.lt.s32.totalorder %s21, 1
      %s261 = scalar_select %p260, %s21, 1
      %p262 = scmp.lt.s32.totalorder %s254, 8
      %s263 = scalar_select %p262, %s254, 8
      %s264 = smul.addr %s263, 2
      %s265 = smul.addr %s261, 18
      %s266 = sadd.s32 %s264, %s265
      %s267 = smul.addr %s266, 4
      %s268 = scalar_lea.vmem %s0, %s267
      %p269 = pneg %p52
      %p270 = pneg %p49
      %s271 = sadd.s32 %s22, 1
      %s272 = smul.u32 %s271, 8
      %p273 = scmp.lt.s32.totalorder %s21, 1
      %s274 = scalar_select %p273, %s21, 1
      %p275 = scmp.lt.s32.totalorder %s272, 8
      %s276 = scalar_select %p275, %s272, 8
      %s277 = smul.addr %s276, 2
      %s278 = smul.addr %s274, 18
      %s279 = sadd.s32 %s277, %s278
      %s280 = smul.addr %s279, 4
      %s281 = scalar_lea.vmem %s1, %s280
      %p282 = pneg %p84
      %p283 = pneg %p81
      %p284 = pneg %p105
      %p285 = pneg %p102
      %p286 = pneg %p126
      %p287 = pneg %p123
      %p288 = pneg %p154
      %p289 = pneg %p151
      %p290 = scmp.lt.s32.totalorder %s21, 1
      %s291 = scalar_select %p290, %s21, 1
      %p292 = scmp.lt.s32.totalorder %s22, 0
      %s293 = scalar_select %p292, %s22, 0
      %s294 = smul.addr %s293, 8
      %s295 = smul.addr %s291, 8
      %s296 = sadd.s32 %s294, %s295
      %s297 = smul.addr %s296, 4
      %s298 = scalar_lea.vmem %s4, %s297
      %p299 = pneg %p182
      %p300 = pneg %p179
      %p301 = scmp.lt.s32.totalorder %s21, 1
      %s302 = scalar_select %p301, %s21, 1
      %p303 = scmp.lt.s32.totalorder %s22, 0
      %s304 = scalar_select %p303, %s22, 0
      %s305 = sadd.s32 %s304, %s302
      %s306 = smul.addr %s305, 2
      %s307 = scalar_lea.vmem %s5, %s306
      %s308 = smul.u32 8, %s22
      %s309 = ssub.s32 9, %s308
      %p310 = scmp.lt.s32.totalorder %s309, 8
      %s311 = scalar_select %p310, %s309, 8
      %s312 = smul.u32 4, %s311
      %s313 = smul.u32 %s312, 2
      %p314 = scmp.lt.s32.totalorder %s21, 1
      %s315 = scalar_select %p314, %s21, 1
      %p316 = scmp.lt.s32.totalorder %s308, 8
      %s317 = scalar_select %p316, %s308, 8
      %s318 = smul.addr %s317, 2
      %s319 = smul.addr %s315, 18
      %s320 = sadd.s32 %s318, %s319
      %s321 = smul.addr %s320, 4
      %s322 = scalar_lea.vmem %s0, %s321
      %s323 = smul.u32 8, %s22
      %s324 = ssub.s32 9, %s323
      %p325 = scmp.lt.s32.totalorder %s324, 8
      %s326 = scalar_select %p325, %s324, 8
      %s327 = smul.u32 4, %s326
      %s328 = smul.u32 %s327, 2
      %s329 = sadd.s32 %s22, 1
      %s330 = smul.u32 %s329, 8
      %p331 = scmp.lt.s32.totalorder %s21, 1
      %s332 = scalar_select %p331, %s21, 1
      %p333 = scmp.lt.s32.totalorder %s330, 8
      %s334 = scalar_select %p333, %s330, 8
      %s335 = smul.addr %s334, 2
      %s336 = smul.addr %s332, 18
      %s337 = sadd.s32 %s335, %s336
      %s338 = smul.addr %s337, 4
      %s339 = scalar_lea.vmem %s1, %s338
      %s340 = sadd.s32 %s22, 1
      %s341 = smul.u32 %s340, 8
      %p342 = scmp.lt.s32.totalorder %s21, 1
      %s343 = scalar_select %p342, %s21, 1
      %p344 = scmp.lt.s32.totalorder %s22, 0
      %s345 = scalar_select %p344, %s22, 0
      %s346 = smul.addr %s345, 8
      %s347 = smul.addr %s343, 8
      %s348 = sadd.s32 %s346, %s347
      %s349 = smul.addr %s348, 4
      %s350 = scalar_lea.vmem %s4, %s349
      %p351 = scmp.lt.s32.totalorder %s21, 1
      %s352 = scalar_select %p351, %s21, 1
      %p353 = scmp.lt.s32.totalorder %s22, 0
      %s354 = scalar_select %p353, %s22, 0
      %s355 = sadd.s32 %s354, %s352
      %s356 = smul.addr %s355, 2
      %s357 = scalar_lea.vmem %s5, %s356
      %v359 = vld [vmem:[%s322] sm:$0xf]
      %v360 = vld [vmem:[%s322 + $0x8] sm:$0xf]
      %v361 = vld [vmem:[%s322 + $0x10] sm:$0xf]
      %v362 = vld [vmem:[%s322 + $0x18] sm:$0xf]
      %v363 = vld [vmem:[%s322 + $0x20] sm:$0xf]
      %v364 = vld [vmem:[%s322 + $0x28] sm:$0xf]
      %v365 = vld [vmem:[%s322 + $0x30] sm:$0xf]
      %v366 = vld [vmem:[%s322 + $0x38] sm:$0xf]
      %v367 = vld [vmem:[%s322 + $0x4] sm:$0x1]
      %v368 = vld [vmem:[%s322 + $0xc] sm:$0x1]
      %v369 = vld [vmem:[%s322 + $0x14] sm:$0x1]
      %v370 = vld [vmem:[%s322 + $0x1c] sm:$0x1]
      %v371 = vld [vmem:[%s322 + $0x24] sm:$0x1]
      %v372 = vld [vmem:[%s322 + $0x2c] sm:$0x1]
      %v373 = vld [vmem:[%s322 + $0x34] sm:$0x1]
      %v374 = vld [vmem:[%s322 + $0x3c] sm:$0x1]
      %vm375 = vsmask.f32 3328
      %vm376 = vsmask.f32 7440
      %vm377 = vmor %vm375, %vm376
      %v379 = vshrl.u32 %v359, 16
      %v381 = vrot.slane %v379, 4
      %v382 = vshll.u32 %v359, 16
      %v384 = vrot.slane %v382, 5
      %v385 = vor.u32 %v381, %v384
      %v386 = vrot.slane %v385, 4
      %v388 = vshll.u32 %v367, 16
      %v390 = vrot.slane %v388, 5
      %v391 = vsel %vm377, %v386, %v390
      %v393 = vshrl.u32 %v360, 16
      %v395 = vrot.slane %v393, 4
      %v396 = vshll.u32 %v360, 16
      %v398 = vrot.slane %v396, 5
      %v399 = vor.u32 %v395, %v398
      %v400 = vrot.slane %v399, 4
      %v402 = vshll.u32 %v368, 16
      %v404 = vrot.slane %v402, 5
      %v405 = vsel %vm377, %v400, %v404
      %v407 = vshrl.u32 %v361, 16
      %v409 = vrot.slane %v407, 4
      %v410 = vshll.u32 %v361, 16
      %v412 = vrot.slane %v410, 5
      %v413 = vor.u32 %v409, %v412
      %v414 = vrot.slane %v413, 4
      %v416 = vshll.u32 %v369, 16
      %v418 = vrot.slane %v416, 5
      %v419 = vsel %vm377, %v414, %v418
      %v421 = vshrl.u32 %v362, 16
      %v423 = vrot.slane %v421, 4
      %v424 = vshll.u32 %v362, 16
      %v426 = vrot.slane %v424, 5
      %v427 = vor.u32 %v423, %v426
      %v428 = vrot.slane %v427, 4
      %v430 = vshll.u32 %v370, 16
      %v432 = vrot.slane %v430, 5
      %v433 = vsel %vm377, %v428, %v432
      %v435 = vshrl.u32 %v363, 16
      %v437 = vrot.slane %v435, 4
      %v438 = vshll.u32 %v363, 16
      %v440 = vrot.slane %v438, 5
      %v441 = vor.u32 %v437, %v440
      %v442 = vrot.slane %v441, 4
      %v444 = vshll.u32 %v371, 16
      %v446 = vrot.slane %v444, 5
      %v447 = vsel %vm377, %v442, %v446
      %v449 = vshrl.u32 %v364, 16
      %v451 = vrot.slane %v449, 4
      %v452 = vshll.u32 %v364, 16
      %v454 = vrot.slane %v452, 5
      %v455 = vor.u32 %v451, %v454
      %v456 = vrot.slane %v455, 4
      %v458 = vshll.u32 %v372, 16
      %v460 = vrot.slane %v458, 5
      %v461 = vsel %vm377, %v456, %v460
      %v463 = vshrl.u32 %v365, 16
      %v465 = vrot.slane %v463, 4
      %v466 = vshll.u32 %v365, 16
      %v468 = vrot.slane %v466, 5
      %v469 = vor.u32 %v465, %v468
      %v470 = vrot.slane %v469, 4
      %v472 = vshll.u32 %v373, 16
      %v474 = vrot.slane %v472, 5
      %v475 = vsel %vm377, %v470, %v474
      %v477 = vshrl.u32 %v366, 16
      %v479 = vrot.slane %v477, 4
      %v480 = vshll.u32 %v366, 16
      %v482 = vrot.slane %v480, 5
      %v483 = vor.u32 %v479, %v482
      %v484 = vrot.slane %v483, 4
      %v486 = vshll.u32 %v374, 16
      %v488 = vrot.slane %v486, 5
      %v489 = vsel %vm377, %v484, %v488
      %s490 = scalar_lea.vmem %s322, 8
      %v491 = vld [vmem:[%s490] sm:$0xf]
      %v492 = vld [vmem:[%s490 + $0x4] sm:$0x1]
      %v493 = vld [vmem:[%s490 + $0x8] sm:$0xf]
      %v494 = vld [vmem:[%s490 + $0xc] sm:$0x1]
      %v495 = vld [vmem:[%s490 + $0x10] sm:$0xf]
      %v496 = vld [vmem:[%s490 + $0x14] sm:$0x1]
      %v497 = vld [vmem:[%s490 + $0x18] sm:$0xf]
      %v498 = vld [vmem:[%s490 + $0x1c] sm:$0x1]
      %v499 = vld [vmem:[%s490 + $0x20] sm:$0xf]
      %v500 = vld [vmem:[%s490 + $0x24] sm:$0x1]
      %v501 = vld [vmem:[%s490 + $0x28] sm:$0xf]
      %v502 = vld [vmem:[%s490 + $0x2c] sm:$0x1]
      %v503 = vld [vmem:[%s490 + $0x30] sm:$0xf]
      %v504 = vld [vmem:[%s490 + $0x34] sm:$0x1]
      %v505 = vld [vmem:[%s339] sm:$0xf]
      %v506 = vld [vmem:[%s339 + $0x4] sm:$0x1]
      %v508 = vshrl.u32 %v491, 16
      %v510 = vrot.slane %v508, 4
      %v511 = vshll.u32 %v491, 16
      %v513 = vrot.slane %v511, 5
      %v514 = vor.u32 %v510, %v513
      %v515 = vrot.slane %v514, 4
      %v517 = vshll.u32 %v492, 16
      %v519 = vrot.slane %v517, 5
      %v520 = vsel %vm377, %v515, %v519
      %v522 = vshrl.u32 %v493, 16
      %v524 = vrot.slane %v522, 4
      %v525 = vshll.u32 %v493, 16
      %v527 = vrot.slane %v525, 5
      %v528 = vor.u32 %v524, %v527
      %v529 = vrot.slane %v528, 4
      %v531 = vshll.u32 %v494, 16
      %v533 = vrot.slane %v531, 5
      %v534 = vsel %vm377, %v529, %v533
      %v536 = vshrl.u32 %v495, 16
      %v538 = vrot.slane %v536, 4
      %v539 = vshll.u32 %v495, 16
      %v541 = vrot.slane %v539, 5
      %v542 = vor.u32 %v538, %v541
      %v543 = vrot.slane %v542, 4
      %v545 = vshll.u32 %v496, 16
      %v547 = vrot.slane %v545, 5
      %v548 = vsel %vm377, %v543, %v547
      %v550 = vshrl.u32 %v497, 16
      %v552 = vrot.slane %v550, 4
      %v553 = vshll.u32 %v497, 16
      %v555 = vrot.slane %v553, 5
      %v556 = vor.u32 %v552, %v555
      %v557 = vrot.slane %v556, 4
      %v559 = vshll.u32 %v498, 16
      %v561 = vrot.slane %v559, 5
      %v562 = vsel %vm377, %v557, %v561
      %v564 = vshrl.u32 %v499, 16
      %v566 = vrot.slane %v564, 4
      %v567 = vshll.u32 %v499, 16
      %v569 = vrot.slane %v567, 5
      %v570 = vor.u32 %v566, %v569
      %v571 = vrot.slane %v570, 4
      %v573 = vshll.u32 %v500, 16
      %v575 = vrot.slane %v573, 5
      %v576 = vsel %vm377, %v571, %v575
      %v578 = vshrl.u32 %v501, 16
      %v580 = vrot.slane %v578, 4
      %v581 = vshll.u32 %v501, 16
      %v583 = vrot.slane %v581, 5
      %v584 = vor.u32 %v580, %v583
      %v585 = vrot.slane %v584, 4
      %v587 = vshll.u32 %v502, 16
      %v589 = vrot.slane %v587, 5
      %v590 = vsel %vm377, %v585, %v589
      %v592 = vshrl.u32 %v503, 16
      %v594 = vrot.slane %v592, 4
      %v595 = vshll.u32 %v503, 16
      %v597 = vrot.slane %v595, 5
      %v598 = vor.u32 %v594, %v597
      %v599 = vrot.slane %v598, 4
      %v601 = vshll.u32 %v504, 16
      %v603 = vrot.slane %v601, 5
      %v604 = vsel %vm377, %v599, %v603
      %v606 = vshrl.u32 %v505, 16
      %v608 = vrot.slane %v606, 4
      %v609 = vshll.u32 %v505, 16
      %v611 = vrot.slane %v609, 5
      %v612 = vor.u32 %v608, %v611
      %v613 = vrot.slane %v612, 4
      %v615 = vshll.u32 %v506, 16
      %v617 = vrot.slane %v615, 5
      %v618 = vsel %vm377, %v613, %v617
      %v619 = vld [vmem:[%s2] sm:$0xf]
      %v620 = vld [vmem:[%s2 + $0x4] sm:$0xf]
      %s621 = scalar_lea.vmem %s2, 8
      %v622 = vld [vmem:[%s621] sm:$0xf]
      %v623 = vld [vmem:[%s621 + $0x4] sm:$0xf]
      %v624 = vunpack.c.l.b16 %v391
      %v625 = vunpack.c.l.b16 %v405
      %v626 = vunpack.c.l.b16 %v419
      %v627 = vunpack.c.l.b16 %v433
      %v628 = vunpack.c.l.b16 %v447
      %v629 = vunpack.c.l.b16 %v461
      %v630 = vunpack.c.l.b16 %v475
      %v631 = vunpack.c.l.b16 %v489
      %v632 = vpack.c.b16 %v625, %v624
      %v633 = vpack.c.b16 %v627, %v626
      %v634 = vpack.c.b16 %v629, %v628
      %v635 = vpack.c.b16 %v631, %v630
      %v638 = vunpack.c.l.b16 %v622
      %v639 = vunpack.c.l.b16 %v623
      %v640 = vpack.c.b16 %v639, %v638
      %vm642 = vcmask 130048
      %v644 = vsel %vm642, %v632, 0
      %v647 = vsel %vm642, %v633, 0
      %v650 = vsel %vm642, %v634, 0
      %v653 = vsel %vm642, %v635, 0
      %655 = vmatpush.bf16.msra.mxu0 0
      %656 = vmatpush.bf16.msra.mxu0 0
      %657 = vmatpush.bf16.msra.mxu0 0
      %658 = vmatpush.bf16.msra.mxu0 0
      %659 = vmatpush.bf16.msra.mxu0 0
      %660 = vmatpush.bf16.msra.mxu0 0
      %661 = vmatpush.bf16.msra.mxu0 0
      %662 = vmatpush.bf16.msra.mxu0 %v640
      %663 = vmatmul.bf16.gmra.mxu0 %v644
      %v664 = vpop.f32.mrf.mxu0
      %v665 = vadd.f32 0.0, %v664
      %v666 = vpop.f32.mrf.mxu0
      %v667 = vadd.f32 0.0, %v666
      %668 = vmatmul.bf16.gmra.mxu0 %v647
      %v669 = vpop.f32.mrf.mxu0
      %v670 = vadd.f32 0.0, %v669
      %v671 = vpop.f32.mrf.mxu0
      %v672 = vadd.f32 0.0, %v671
      %673 = vmatmul.bf16.gmra.mxu0 %v650
      %v674 = vpop.f32.mrf.mxu0
      %v675 = vadd.f32 0.0, %v674
      %v676 = vpop.f32.mrf.mxu0
      %v677 = vadd.f32 0.0, %v676
      %678 = vmatmul.bf16.gmra.mxu0 %v653
      %v679 = vpop.f32.mrf.mxu0
      %v680 = vadd.f32 0.0, %v679
      %v681 = vpop.f32.mrf.mxu0
      %v682 = vadd.f32 0.0, %v681
      %683 = vdwg.mxu0
      %v692 = vunpack.c.l.b16 %v359
      %v693 = vunpack.c.l.b16 %v360
      %v694 = vunpack.c.l.b16 %v361
      %v695 = vunpack.c.l.b16 %v362
      %v696 = vunpack.c.l.b16 %v363
      %v697 = vunpack.c.l.b16 %v364
      %v698 = vunpack.c.l.b16 %v365
      %v699 = vunpack.c.l.b16 %v366
      %v700 = vpack.c.b16 %v693, %v692
      %v701 = vpack.c.b16 %v695, %v694
      %v702 = vpack.c.b16 %v697, %v696
      %v703 = vpack.c.b16 %v699, %v698
      %v706 = vunpack.c.l.b16 %v619
      %v707 = vunpack.c.l.b16 %v620
      %v708 = vpack.c.b16 %v707, %v706
      %v711 = vsel %vm642, %v700, 0
      %v714 = vsel %vm642, %v701, 0
      %v717 = vsel %vm642, %v702, 0
      %v720 = vsel %vm642, %v703, 0
      %722 = vmatpush.bf16.msra.mxu0 0
      %723 = vmatpush.bf16.msra.mxu0 0
      %724 = vmatpush.bf16.msra.mxu0 0
      %725 = vmatpush.bf16.msra.mxu0 0
      %726 = vmatpush.bf16.msra.mxu0 0
      %727 = vmatpush.bf16.msra.mxu0 0
      %728 = vmatpush.bf16.msra.mxu0 0
      %729 = vmatpush.bf16.msra.mxu0 %v708
      %730 = vmatmul.bf16.gmra.mxu0 %v711
      %v731 = vpop.f32.mrf.mxu0
      %v732 = vadd.f32 %v665, %v731
      %v733 = vpop.f32.mrf.mxu0
      %v734 = vadd.f32 %v667, %v733
      %735 = vmatmul.bf16.gmra.mxu0 %v714
      %v736 = vpop.f32.mrf.mxu0
      %v737 = vadd.f32 %v670, %v736
      %v738 = vpop.f32.mrf.mxu0
      %v739 = vadd.f32 %v672, %v738
      %740 = vmatmul.bf16.gmra.mxu0 %v717
      %v741 = vpop.f32.mrf.mxu0
      %v742 = vadd.f32 %v675, %v741
      %v743 = vpop.f32.mrf.mxu0
      %v744 = vadd.f32 %v677, %v743
      %745 = vmatmul.bf16.gmra.mxu0 %v720
      %v746 = vpop.f32.mrf.mxu0
      %v747 = vadd.f32 %v680, %v746
      %v748 = vpop.f32.mrf.mxu0
      %v749 = vadd.f32 %v682, %v748
      %750 = vdwg.mxu0
      %s751 = scalar_lea.vmem %s2, 16
      %v752 = vld [vmem:[%s751] sm:$0xf]
      %v753 = vld [vmem:[%s751 + $0x4] sm:$0xf]
      %v762 = vunpack.c.l.b16 %v491
      %v763 = vunpack.c.l.b16 %v493
      %v764 = vunpack.c.l.b16 %v495
      %v765 = vunpack.c.l.b16 %v497
      %v766 = vunpack.c.l.b16 %v499
      %v767 = vunpack.c.l.b16 %v501
      %v768 = vunpack.c.l.b16 %v503
      %v769 = vunpack.c.l.b16 %v505
      %v770 = vpack.c.b16 %v763, %v762
      %v771 = vpack.c.b16 %v765, %v764
      %v772 = vpack.c.b16 %v767, %v766
      %v773 = vpack.c.b16 %v769, %v768
      %v776 = vunpack.c.l.b16 %v752
      %v777 = vunpack.c.l.b16 %v753
      %v778 = vpack.c.b16 %v777, %v776
      %v781 = vsel %vm642, %v770, 0
      %v784 = vsel %vm642, %v771, 0
      %v787 = vsel %vm642, %v772, 0
      %v790 = vsel %vm642, %v773, 0
      %792 = vmatpush.bf16.msra.mxu0 0
      %793 = vmatpush.bf16.msra.mxu0 0
      %794 = vmatpush.bf16.msra.mxu0 0
      %795 = vmatpush.bf16.msra.mxu0 0
      %796 = vmatpush.bf16.msra.mxu0 0
      %797 = vmatpush.bf16.msra.mxu0 0
      %798 = vmatpush.bf16.msra.mxu0 0
      %799 = vmatpush.bf16.msra.mxu0 %v778
      %800 = vmatmul.bf16.gmra.mxu0 %v781
      %v801 = vpop.f32.mrf.mxu0
      %v802 = vadd.f32 0.0, %v801
      %v803 = vpop.f32.mrf.mxu0
      %v804 = vadd.f32 0.0, %v803
      %805 = vmatmul.bf16.gmra.mxu0 %v784
      %v806 = vpop.f32.mrf.mxu0
      %v807 = vadd.f32 0.0, %v806
      %v808 = vpop.f32.mrf.mxu0
      %v809 = vadd.f32 0.0, %v808
      %810 = vmatmul.bf16.gmra.mxu0 %v787
      %v811 = vpop.f32.mrf.mxu0
      %v812 = vadd.f32 0.0, %v811
      %v813 = vpop.f32.mrf.mxu0
      %v814 = vadd.f32 0.0, %v813
      %815 = vmatmul.bf16.gmra.mxu0 %v790
      %v816 = vpop.f32.mrf.mxu0
      %v817 = vadd.f32 0.0, %v816
      %v818 = vpop.f32.mrf.mxu0
      %v819 = vadd.f32 0.0, %v818
      %820 = vdwg.mxu0
      %v821 = vadd.f32 %v732, %v802
      %v822 = vadd.f32 %v734, %v804
      %v823 = vadd.f32 %v737, %v807
      %v824 = vadd.f32 %v739, %v809
      %v825 = vadd.f32 %v742, %v812
      %v826 = vadd.f32 %v744, %v814
      %v827 = vadd.f32 %v747, %v817
      %v828 = vadd.f32 %v749, %v819
      %s829 = scalar_lea.vmem %s2, 24
      %v830 = vld [vmem:[%s829] sm:$0xf]
      %v831 = vld [vmem:[%s829 + $0x4] sm:$0xf]
      %v832 = vunpack.c.l.b16 %v520
      %v833 = vunpack.c.l.b16 %v534
      %v834 = vunpack.c.l.b16 %v548
      %v835 = vunpack.c.l.b16 %v562
      %v836 = vunpack.c.l.b16 %v576
      %v837 = vunpack.c.l.b16 %v590
      %v838 = vunpack.c.l.b16 %v604
      %v839 = vunpack.c.l.b16 %v618
      %v840 = vpack.c.b16 %v833, %v832
      %v841 = vpack.c.b16 %v835, %v834
      %v842 = vpack.c.b16 %v837, %v836
      %v843 = vpack.c.b16 %v839, %v838
      %v846 = vunpack.c.l.b16 %v830
      %v847 = vunpack.c.l.b16 %v831
      %v848 = vpack.c.b16 %v847, %v846
      %v851 = vsel %vm642, %v840, 0
      %v854 = vsel %vm642, %v841, 0
      %v857 = vsel %vm642, %v842, 0
      %v860 = vsel %vm642, %v843, 0
      %862 = vmatpush.bf16.msra.mxu0 0
      %863 = vmatpush.bf16.msra.mxu0 0
      %864 = vmatpush.bf16.msra.mxu0 0
      %865 = vmatpush.bf16.msra.mxu0 0
      %866 = vmatpush.bf16.msra.mxu0 0
      %867 = vmatpush.bf16.msra.mxu0 0
      %868 = vmatpush.bf16.msra.mxu0 0
      %869 = vmatpush.bf16.msra.mxu0 %v848
      %870 = vmatmul.bf16.gmra.mxu0 %v851
      %v871 = vpop.f32.mrf.mxu0
      %v872 = vadd.f32 0.0, %v871
      %v873 = vpop.f32.mrf.mxu0
      %v874 = vadd.f32 0.0, %v873
      %875 = vmatmul.bf16.gmra.mxu0 %v854
      %v876 = vpop.f32.mrf.mxu0
      %v877 = vadd.f32 0.0, %v876
      %v878 = vpop.f32.mrf.mxu0
      %v879 = vadd.f32 0.0, %v878
      %880 = vmatmul.bf16.gmra.mxu0 %v857
      %v881 = vpop.f32.mrf.mxu0
      %v882 = vadd.f32 0.0, %v881
      %v883 = vpop.f32.mrf.mxu0
      %v884 = vadd.f32 0.0, %v883
      %885 = vmatmul.bf16.gmra.mxu0 %v860
      %v886 = vpop.f32.mrf.mxu0
      %v887 = vadd.f32 0.0, %v886
      %v888 = vpop.f32.mrf.mxu0
      %v889 = vadd.f32 0.0, %v888
      %890 = vdwg.mxu0
      %v891 = vadd.f32 %v821, %v872
      %v892 = vadd.f32 %v822, %v874
      %v893 = vadd.f32 %v823, %v877
      %v894 = vadd.f32 %v824, %v879
      %v895 = vadd.f32 %v825, %v882
      %v896 = vadd.f32 %v826, %v884
      %v897 = vadd.f32 %v827, %v887
      %v898 = vadd.f32 %v828, %v889
      %v899 = vld [vmem:[%s3] sm:$0x1]
      %v901 = vperm.slane %v899, 0
      %v903 = vadd.f32 %v891, %v901
      %v904 = vadd.f32 %v892, %v901
      %v905 = vadd.f32 %v893, %v901
      %v906 = vadd.f32 %v894, %v901
      %v907 = vadd.f32 %v895, %v901
      %v908 = vadd.f32 %v896, %v901
      %v909 = vadd.f32 %v897, %v901
      %v910 = vadd.f32 %v898, %v901
      %v911 = vadd.f32 %v903, %v904
      %v912 = vadd.f32 %v911, %v905
      %v913 = vadd.f32 %v912, %v906
      %v914 = vadd.f32 %v913, %v907
      %v915 = vadd.f32 %v914, %v908
      %v916 = vadd.f32 %v915, %v909
      %v917 = vadd.f32 %v916, %v910
      %v918 = vrot.slane %v917, 4
      %v919 = vadd.f32 %v917, %v918
      %v920 = vrot.slane %v919, 2
      %v921 = vadd.f32 %v919, %v920
      %v922 = vrot.slane %v921, 1
      %v923 = vadd.f32 %v921, %v922
      %924 = vst [vmem:[%s357] sm:$0x1] %v923
      %v925 = vmul.f32 %v903, %v903
      %v926 = vmul.f32 %v904, %v904
      %v927 = vmul.f32 %v905, %v905
      %v928 = vmul.f32 %v906, %v906
      %v929 = vmul.f32 %v907, %v907
      %v930 = vmul.f32 %v908, %v908
      %v931 = vmul.f32 %v909, %v909
      %v932 = vmul.f32 %v910, %v910
      %v933 = vadd.f32 %v925, %v926
      %v934 = vadd.f32 %v933, %v927
      %v935 = vadd.f32 %v934, %v928
      %v936 = vadd.f32 %v935, %v929
      %v937 = vadd.f32 %v936, %v930
      %v938 = vadd.f32 %v937, %v931
      %v939 = vadd.f32 %v938, %v932
      %v940 = vrot.slane %v939, 4
      %v941 = vadd.f32 %v939, %v940
      %v942 = vrot.slane %v941, 2
      %v943 = vadd.f32 %v941, %v942
      %v944 = vrot.slane %v943, 1
      %v945 = vadd.f32 %v943, %v944
      %946 = vst [vmem:[%s357 + $0x1] sm:$0x1] %v945
      %v947 = vpack.c.bf16 %v903, %v903
      %v948 = vpack.c.bf16 %v904, %v904
      %v949 = vpack.c.bf16 %v905, %v905
      %v950 = vpack.c.bf16 %v906, %v906
      %v951 = vpack.c.bf16 %v907, %v907
      %v952 = vpack.c.bf16 %v908, %v908
      %v953 = vpack.c.bf16 %v909, %v909
      %v954 = vpack.c.bf16 %v910, %v910
      %955 = vst [vmem:[%s350] sm:$0xf] %v947
      %956 = vst [vmem:[%s350 + $0x4] sm:$0xf] %v948
      %957 = vst [vmem:[%s350 + $0x8] sm:$0xf] %v949
      %958 = vst [vmem:[%s350 + $0xc] sm:$0xf] %v950
      %959 = vst [vmem:[%s350 + $0x10] sm:$0xf] %v951
      %960 = vst [vmem:[%s350 + $0x14] sm:$0xf] %v952
      %961 = vst [vmem:[%s350 + $0x18] sm:$0xf] %v953
      %962 = vst [vmem:[%s350 + $0x1c] sm:$0xf] %v954
      %p963 = scmp.lt.s32.totalorder %s21, 1
      %s964 = scalar_select %p963, %s21, 1
      %p965 = scmp.lt.s32.totalorder %s22, 0
      %s966 = scalar_select %p965, %s22, 0
      %s967 = smul.addr %s966, 8
      %s968 = smul.addr %s964, 8
      %s969 = sadd.s32 %s967, %s968
      %s970 = smul.addr %s969, 4
      %s971 = scalar_lea.vmem %s4, %s970
      %p972 = scmp.lt.s32.totalorder %s21, 1
      %s973 = scalar_select %p972, %s21, 1
      %p974 = scmp.lt.s32.totalorder %s22, 0
      %s975 = scalar_select %p974, %s22, 0
      %s976 = sadd.s32 %s975, %s973
      %s977 = smul.addr %s976, 2
      %s978 = scalar_lea.vmem %s5, %s977
      // Predicated region
      $region37: #{conv_block_forward.2} parent=35 // pred_check
        %p979 = pneg %p151
      $region38: #{conv_block_forward.2} parent=35 // pred_check_branch
        %981 = sbr.rel (%p979) target = $region40
      $region39: #{conv_block_forward.2} parent=35 // pred_region
        _
      $region40: #{conv_block_forward.2} parent=35 // pred_fallthru
        _
      // Predicated region
      $region41: #{conv_block_forward.2} parent=35 // pred_check
        %p982 = pneg %p179
      $region42: #{conv_block_forward.2} parent=35 // pred_check_branch
        %984 = sbr.rel (%p982) target = $region44
      $region43: #{conv_block_forward.2} parent=35 // pred_region
        _
      $region44: #{conv_block_forward.2} parent=35 // pred_fallthru
        _
    $region36: #{conv_block_forward.2} parent=5 // pred_fallthru
      _
    %p985 = scmp.le.s32.totalorder 2, %s12
    // Predicated region
    $region45: #{conv_block_forward.2} parent=5 // pred_check
      %p986 = pneg %p985
    $region46: #{conv_block_forward.2} parent=5 // pred_check_branch
      %988 = sbr.rel (%p986) target = $region48
    $region47: #{conv_block_forward.2} parent=5 // pred_region
      %s989 = ssub.s32 %s12, 2
      // Predicated region
      $region49: #{conv_block_forward.2} parent=47 // pred_check
        %p990 = pneg %p157
      $region50: #{conv_block_forward.2} parent=47 // pred_check_branch
        %992 = sbr.rel (%p990) target = $region52
      $region51: #{conv_block_forward.2} parent=47 // pred_region
        %p993 = scmp.lt.s32.totalorder %s23, 1
        %s994 = scalar_select %p993, %s23, 1
        %p995 = scmp.lt.s32.totalorder %s24, 0
        %s996 = scalar_select %p995, %s24, 0
        %s997 = smul.addr %s996, 8
        %s998 = smul.addr %s994, 8
        %s999 = sadd.s32 %s997, %s998
        %s1000 = smul.addr %s999, 4
        %s1001 = scalar_lea.vmem %s4, %s1000
      $region52: #{conv_block_forward.2} parent=47 // pred_fallthru
        _
      // Predicated region
      $region53: #{conv_block_forward.2} parent=47 // pred_check
        %p1002 = pneg %p185
      $region54: #{conv_block_forward.2} parent=47 // pred_check_branch
        %1004 = sbr.rel (%p1002) target = $region56
      $region55: #{conv_block_forward.2} parent=47 // pred_region
        %p1005 = scmp.lt.s32.totalorder %s23, 1
        %s1006 = scalar_select %p1005, %s23, 1
        %p1007 = scmp.lt.s32.totalorder %s24, 0
        %s1008 = scalar_select %p1007, %s24, 0
        %s1009 = sadd.s32 %s1008, %s1006
        %s1010 = smul.addr %s1009, 2
        %s1011 = scalar_lea.vmem %s5, %s1010
      $region56: #{conv_block_forward.2} parent=47 // pred_fallthru
        _
    $region48: #{conv_block_forward.2} parent=5 // pred_fallthru
      _
  $region6: #{conv_block_forward.2} parent=0 // loop_footer
    %s16 = sadd.s32 1, %s12
  $region7: #{conv_block_forward.2} parent=0 // loop_footer_branch
    %11 = sbr.rel target = $region3
  $region8: #{conv_block_forward.2} parent=0 // loop_exit
    _

</llo_original>
